<compile_context>
chip_gen: v5e
topology: v5e:2x2
jax: 0.10.0
libtpu: 0.0.40
codegen_flags: <defaults>
</compile_context>

<pallas_src>
import functools

import jax
import jax.numpy as jnp
from jax.experimental import pallas as pl
from jax.experimental.pallas import tpu as pltpu


def _ae_kernel(x_ref, w1_ref, gamma_ref, beta_ref, w2_ref, b2_ref,
               o_ref, sum_ref, sq_ref, scale_ref, shift_ref, *h_cache,
               inv_n, cache_h):
    p = pl.program_id(0)          # 0 = statistics pass, 1 = apply pass
    i = pl.program_id(1)          # batch tile index
    n_b = pl.num_programs(1)

    def encoder():
        # bf16 inputs, f32 accumulation on the MXU.  b1 is omitted: training-
        # mode BatchNorm subtracts the batch mean, cancelling it exactly.
        return jnp.dot(x_ref[...], w1_ref[...],
                       preferred_element_type=jnp.float32)

    @pl.when(p == 0)
    def _stats_phase():
        h = encoder()
        if cache_h:
            h_cache[0][i] = h.astype(h_cache[0].dtype)

        @pl.when(i == 0)
        def _():
            sum_ref[...] = jnp.zeros_like(sum_ref)
            sq_ref[...] = jnp.zeros_like(sq_ref)

        # No batch-padding mask needed: padded x rows are exact zeros, so
        # their h rows are exactly zero and add nothing to sum / sumsq.
        sum_ref[...] += jnp.sum(h, axis=0, keepdims=True)
        sq_ref[...] += jnp.sum(h * h, axis=0, keepdims=True)

        @pl.when(i == n_b - 1)
        def _():
            mean = sum_ref[...] * inv_n
            # E[h^2] - E[h]^2 in f32; clamp tiny negative round-off.  (A
            # shifted/Welford accumulation would be more robust for very
            # large per-feature means; fine at bf16-input accuracy.)
            var = jnp.maximum(sq_ref[...] * inv_n - mean * mean, 0.0)
            scale = gamma_ref[...] * jax.lax.rsqrt(var + 1e-5)
            scale_ref[...] = scale
            shift_ref[...] = beta_ref[...] - mean * scale

    @pl.when(p == 1)
    def _apply_phase():
        if cache_h:
            h = h_cache[0][i].astype(jnp.float32)
        else:
            h = encoder()
        a = h * scale_ref[...] + shift_ref[...]      # folded BatchNorm
        a = jnp.maximum(a, 0.01 * a)                 # LeakyReLU (slope 0.01)
        out = jnp.dot(a.astype(jnp.bfloat16), w2_ref[...],
                      preferred_element_type=jnp.float32) + b2_ref[...]
        o_ref[...] = out.astype(o_ref.dtype)


def _round_up(v, m):
    return (v + m - 1) // m * m


def _vmem_capacity_bytes():
    try:
        cap = getattr(pltpu.get_tpu_info(), "vmem_capacity_bytes", None)
        if cap:
            return int(cap)
    except Exception:
        pass
    return 64 * 1024 * 1024          # conservative default (v7x-sized)


def _pad2(a, rows, cols, dtype):
    a = a.astype(dtype)
    if a.shape == (rows, cols):
        return a                      # skip the pad copy when already aligned
    return jnp.zeros((rows, cols), dtype).at[:a.shape[0], :a.shape[1]].set(a)


def simple_autoencoder(x, w1, b1, gamma, beta, w2, b2, *, block_b=512,
                       force_no_cache=False):
    """Forward pass of SimpleAutoencoder (training-mode BatchNorm).

    x: (B, dim_input) f32.  w1: (dim_input, latent), w2: (latent, dim_input)
    (PyTorch Linear weights pre-transposed to (in, out)).  b1 is accepted for
    API parity but unused: training-mode BatchNorm cancels the encoder bias.
    """
    del b1  # exactly cancelled by the BatchNorm mean subtraction
    B, D = x.shape
    L = w1.shape[1]

    lane = 128
    d_pad = _round_up(D, lane)
    l_pad = _round_up(L, lane)

    # Per-generation VMEM budget.
    cap = _vmem_capacity_bytes()
    if cap <= 64 * 1024 * 1024:                       # v7x-class (64 MiB)
        budget, vmem_limit = 30 * 2**20, 48 * 2**20
    else:                                             # v5e / v6e (128 MiB)
        budget, vmem_limit = 88 * 2**20, 100 * 2**20

    def vmem_est(t, cache):
        x_t = 2 * t * d_pad * 2                       # x tile (bf16, x2 buf)
        o_t = 2 * t * d_pad * 4                       # out tile (f32, x2 buf)
        w = 2 * d_pad * l_pad * 2                     # w1 + w2 (bf16, single)
        vec = (2 * l_pad + d_pad) * 4                 # gamma / beta / b2
        scr = 4 * l_pad * 4                           # sum / sq / scale / shift
        work = 4 * t * l_pad * 4 + t * d_pad * 4      # f32 temporaries
        h_c = _round_up(B, t) * l_pad * 2 if cache else 0
        return x_t + o_t + w + vec + scr + work + h_c

    def shrink(t):
        if t > 128:
            return max(128, _round_up(t // 2, 128))   # keep MXU-friendly tiles
        return max(8, _round_up(t // 2, 8))

    tb0 = min(_round_up(B, 8), _round_up(max(block_b, 8), 8))

    # Prefer the h-cache configuration (removes the redundant encoder matmul
    # and the second x read); fall back to recompute when it cannot fit.
    tb = tb0
    while tb > 8 and vmem_est(tb, True) > budget:
        tb = shrink(tb)
    cache_h = (not force_no_cache) and vmem_est(tb, True) <= budget
    if not cache_h:
        tb = tb0
        while tb > 8 and vmem_est(tb, False) > budget:
            tb = shrink(tb)

    b_pad = _round_up(B, tb)
    n_b = b_pad // tb

    f32, bf16 = jnp.float32, jnp.bfloat16
    x_p = _pad2(x, b_pad, d_pad, bf16)
    # TODO(synk): hoist the weight padding/casting to a one-time prepare step
    # when calling repeatedly with the same parameters.
    w1_p = _pad2(w1, d_pad, l_pad, bf16)
    w2_p = _pad2(w2, l_pad, d_pad, bf16)
    g_p = _pad2(gamma.reshape(1, L), 1, l_pad, f32)
    be_p = _pad2(beta.reshape(1, L), 1, l_pad, f32)
    b2_p = _pad2(b2.reshape(1, D), 1, d_pad, f32)

    if cache_h:
        # Pin x to block 0 during phase 1: h is replayed from the VMEM cache,
        # so x is only streamed from HBM once.
        x_index = lambda p, i: (i * (1 - p), 0)
    else:
        x_index = lambda p, i: (i, 0)

    scratch = [
        pltpu.VMEM((1, l_pad), f32),   # running per-feature sum
        pltpu.VMEM((1, l_pad), f32),   # running per-feature sum of squares
        pltpu.VMEM((1, l_pad), f32),   # folded BN scale
        pltpu.VMEM((1, l_pad), f32),   # folded BN shift
    ]
    if cache_h:
        scratch.append(pltpu.VMEM((n_b, tb, l_pad), bf16))   # encoder cache

    kernel = functools.partial(_ae_kernel, inv_n=1.0 / B, cache_h=cache_h)

    def run(single_buffer_invariants):
        inv_kw = ({"pipeline_mode": pl.Buffered(1)}
                  if single_buffer_invariants else {})
        grid_spec = pltpu.PrefetchScalarGridSpec(
            num_scalar_prefetch=0,
            grid=(2, n_b),                                       # (phase, tile)
            in_specs=[
                pl.BlockSpec((tb, d_pad), x_index),              # x tile
                pl.BlockSpec((d_pad, l_pad), lambda p, i: (0, 0), **inv_kw),
                pl.BlockSpec((1, l_pad), lambda p, i: (0, 0), **inv_kw),
                pl.BlockSpec((1, l_pad), lambda p, i: (0, 0), **inv_kw),
                pl.BlockSpec((l_pad, d_pad), lambda p, i: (0, 0), **inv_kw),
                pl.BlockSpec((1, d_pad), lambda p, i: (0, 0), **inv_kw),
            ],
            # i*p pins the output window to block 0 during the stats phase (no
            # garbage writebacks); phase 1 walks the real output tiles.
            out_specs=pl.BlockSpec((tb, d_pad), lambda p, i: (i * p, 0)),
            scratch_shapes=scratch,
        )
        return pl.pallas_call(
            kernel,
            out_shape=jax.ShapeDtypeStruct((b_pad, d_pad), f32),
            grid_spec=grid_spec,
            compiler_params=pltpu.CompilerParams(
                # Both axes carry cross-step scratch state (BN stats, folded
                # scale/shift, h cache), so neither may be megacore-parallel
                # without breaking full-batch statistics.
                dimension_semantics=("arbitrary", "arbitrary"),
                vmem_limit_bytes=vmem_limit,
            ),
        )(x_p, w1_p, g_p, be_p, w2_p, b2_p)

    try:
        out = run(True)                 # single-buffered invariant weights
    except Exception:
        out = run(False)                # fallback: default double-buffering

    return out[:B, :D]


def init_params(key, dim_input, latent_size):
    """Synthetic init with PyTorch-compatible shapes (weights pre-transposed)."""
    k1, k2, k3, k4 = jax.random.split(key, 4)
    bound1 = 1.0 / jnp.sqrt(dim_input)
    bound2 = 1.0 / jnp.sqrt(latent_size)
    w1 = jax.random.uniform(k1, (dim_input, latent_size), jnp.float32, -bound1, bound1)
    b1 = jax.random.uniform(k2, (1, latent_size), jnp.float32, -bound1, bound1)
    w2 = jax.random.uniform(k3, (latent_size, dim_input), jnp.float32, -bound2, bound2)
    b2 = jax.random.uniform(k4, (1, dim_input), jnp.float32, -bound2, bound2)
    gamma = jnp.ones((1, latent_size), jnp.float32)
    beta = jnp.zeros((1, latent_size), jnp.float32)
    return w1, b1, gamma, beta, w2, b2


def _reference(x, w1, b1, gamma, beta, w2, b2):
    """Pure-f32 reference matching the PyTorch module (training-mode BN)."""
    h = x @ w1 + b1
    mean = jnp.mean(h, axis=0, keepdims=True)
    var = jnp.mean((h - mean) ** 2, axis=0, keepdims=True)
    h = (h - mean) / jnp.sqrt(var + 1e-5) * gamma + beta
    h = jnp.where(h >= 0, h, 0.01 * h)
    return h @ w2 + b2


if __name__ == "__main__":
    # Small shapes; B=40 with block_b=16 exercises multiple batch tiles, a
    # partially padded last tile for the BN statistics, and the VMEM h cache.
    B, dim_input, latent_size = 40, 64, 32
    key = jax.random.PRNGKey(0)
    kx, kp = jax.random.split(key)
    x = jax.random.normal(kx, (B, dim_input), jnp.float32)
    params = init_params(kp, dim_input, latent_size)

    ref = _reference(x, *params)

    # Default path: encoder activation cached in VMEM.
    out = simple_autoencoder(x, *params, block_b=16)
    jax.block_until_ready(out)
    assert out.shape == (B, dim_input)
    # bf16 MXU inputs with f32 accumulation -> loose tolerance vs f32 reference.
    assert jnp.allclose(out, ref, atol=3e-2, rtol=3e-2), float(
        jnp.max(jnp.abs(out - ref)))

    # Fallback path (recompute encoder matmul, no VMEM h cache).
    out2 = simple_autoencoder(x, *params, block_b=16, force_no_cache=True)
    jax.block_until_ready(out2)
    assert jnp.allclose(out2, ref, atol=3e-2, rtol=3e-2), float(
        jnp.max(jnp.abs(out2 - ref)))

    print("KERNEL_OK")
</pallas_src>

<mosaic_0001>
module attributes {stable_mosaic.version = 11 : i64} {
  func.func @_ae_kernel(%arg0: i32, %arg1: i32, %arg2: memref<16x128xbf16, #tpu.memory_space<vmem>>, %arg3: memref<128x128xbf16, #tpu.memory_space<vmem>>, %arg4: memref<1x128xf32, #tpu.memory_space<vmem>>, %arg5: memref<1x128xf32, #tpu.memory_space<vmem>>, %arg6: memref<128x128xbf16, #tpu.memory_space<vmem>>, %arg7: memref<1x128xf32, #tpu.memory_space<vmem>>, %arg8: memref<16x128xf32, #tpu.memory_space<vmem>>, %arg9: memref<1x128xf32, #tpu.memory_space<vmem>>, %arg10: memref<1x128xf32, #tpu.memory_space<vmem>>, %arg11: memref<1x128xf32, #tpu.memory_space<vmem>>, %arg12: memref<1x128xf32, #tpu.memory_space<vmem>>, %arg13: memref<3x16x128xbf16, #tpu.memory_space<vmem>>) attributes {dimension_semantics = [#tpu.dimension_semantics<arbitrary>, #tpu.dimension_semantics<arbitrary>], iteration_bounds = array<i64: 2, 3>, scalar_prefetch = 0 : i64, scratch_operands = 5 : i64, tpu.core_type = #tpu.core_type<tc>, window_params = [{transform_indices = @transform_0, window_bounds = array<i64: 16, 128>}, {pipeline_mode = #tpu.pipeline_mode<synchronous>, transform_indices = @transform_1, window_bounds = array<i64: 128, 128>}, {pipeline_mode = #tpu.pipeline_mode<synchronous>, transform_indices = @transform_2, window_bounds = array<i64: 1, 128>}, {pipeline_mode = #tpu.pipeline_mode<synchronous>, transform_indices = @transform_3, window_bounds = array<i64: 1, 128>}, {pipeline_mode = #tpu.pipeline_mode<synchronous>, transform_indices = @transform_4, window_bounds = array<i64: 128, 128>}, {pipeline_mode = #tpu.pipeline_mode<synchronous>, transform_indices = @transform_5, window_bounds = array<i64: 1, 128>}, {transform_indices = @transform_6, window_bounds = array<i64: 16, 128>}]} {
    %c0_i32 = arith.constant 0 : i32
    %0 = arith.cmpi eq, %arg0, %c0_i32 : i32
    %1 = arith.extui %0 : i1 to i32
    %c0_i32_0 = arith.constant 0 : i32
    %2 = arith.cmpi ne, %1, %c0_i32_0 : i32
    scf.if %2 {
      %c0 = arith.constant 0 : index
      %c0_2 = arith.constant 0 : index
      %6 = vector.load %arg2[%c0, %c0_2] : memref<16x128xbf16, #tpu.memory_space<vmem>>, vector<16x128xbf16>
      %c0_3 = arith.constant 0 : index
      %c0_4 = arith.constant 0 : index
      %7 = vector.load %arg3[%c0_3, %c0_4] : memref<128x128xbf16, #tpu.memory_space<vmem>>, vector<128x128xbf16>
      %cst = arith.constant dense<0.000000e+00> : vector<16x128xf32>
      %8 = tpu.matmul %6, %7, %cst {dimension_numbers = #tpu.dot_dimension_numbers<[1], [0], [0], [1], [0, 0, 1, 1], [], []>} : vector<16x128xbf16>, vector<128x128xbf16>, vector<16x128xf32> -> vector<16x128xf32>
      %9 = arith.truncf %8 : vector<16x128xf32> to vector<16x128xbf16>
      %10 = arith.index_cast %arg1 : i32 to index
      %c0_5 = arith.constant 0 : index
      %c0_6 = arith.constant 0 : index
      %11 = vector.load %arg13[%10, %c0_5, %c0_6] : memref<3x16x128xbf16, #tpu.memory_space<vmem>>, vector<1x16x128xbf16>
      %12 = vector.shape_cast %11 : vector<1x16x128xbf16> to vector<16x128xbf16>
      %13 = vector.shape_cast %9 : vector<16x128xbf16> to vector<1x16x128xbf16>
      tpu.vector_store %arg13[%10, %c0_5, %c0_6], %13 {strides = array<i32>} : memref<3x16x128xbf16, #tpu.memory_space<vmem>>, vector<1x16x128xbf16>,
      %c0_i32_7 = arith.constant 0 : i32
      %14 = arith.cmpi eq, %arg1, %c0_i32_7 : i32
      %15 = arith.extui %14 : i1 to i32
      %c0_i32_8 = arith.constant 0 : i32
      %16 = arith.cmpi ne, %15, %c0_i32_8 : i32
      scf.if %16 {
        %cst_20 = arith.constant 0.000000e+00 : f32
        %31 = vector.broadcast %cst_20 : f32 to vector<1x128xf32>
        %c0_21 = arith.constant 0 : index
        %c0_22 = arith.constant 0 : index
        %32 = vector.load %arg9[%c0_21, %c0_22] : memref<1x128xf32, #tpu.memory_space<vmem>>, vector<1x128xf32>
        tpu.vector_store %arg9[%c0_21, %c0_22], %31 {strides = array<i32>} : memref<1x128xf32, #tpu.memory_space<vmem>>, vector<1x128xf32>,
        %cst_23 = arith.constant 0.000000e+00 : f32
        %33 = vector.broadcast %cst_23 : f32 to vector<1x128xf32>
        %c0_24 = arith.constant 0 : index
        %c0_25 = arith.constant 0 : index
        %34 = vector.load %arg10[%c0_24, %c0_25] : memref<1x128xf32, #tpu.memory_space<vmem>>, vector<1x128xf32>
        tpu.vector_store %arg10[%c0_24, %c0_25], %33 {strides = array<i32>} : memref<1x128xf32, #tpu.memory_space<vmem>>, vector<1x128xf32>,
      } else {
      }
      %c0_9 = arith.constant 0 : index
      %c0_10 = arith.constant 0 : index
      %17 = vector.load %arg9[%c0_9, %c0_10] : memref<1x128xf32, #tpu.memory_space<vmem>>, vector<1x128xf32>
      %cst_11 = arith.constant dense<0.000000e+00> : vector<128xf32>
      %18 = vector.multi_reduction <add>, %8, %cst_11 [0] : vector<16x128xf32> to vector<128xf32>
      %19 = vector.shape_cast %18 : vector<128xf32> to vector<1x128xf32>
      %20 = arith.addf %17, %19 : vector<1x128xf32>
      %c0_12 = arith.constant 0 : index
      %c0_13 = arith.constant 0 : index
      %21 = vector.load %arg9[%c0_12, %c0_13] : memref<1x128xf32, #tpu.memory_space<vmem>>, vector<1x128xf32>
      tpu.vector_store %arg9[%c0_12, %c0_13], %20 {strides = array<i32>} : memref<1x128xf32, #tpu.memory_space<vmem>>, vector<1x128xf32>,
      %c0_14 = arith.constant 0 : index
      %c0_15 = arith.constant 0 : index
      %22 = vector.load %arg10[%c0_14, %c0_15] : memref<1x128xf32, #tpu.memory_space<vmem>>, vector<1x128xf32>
      %23 = arith.mulf %8, %8 : vector<16x128xf32>
      %cst_16 = arith.constant dense<0.000000e+00> : vector<128xf32>
      %24 = vector.multi_reduction <add>, %23, %cst_16 [0] : vector<16x128xf32> to vector<128xf32>
      %25 = vector.shape_cast %24 : vector<128xf32> to vector<1x128xf32>
      %26 = arith.addf %22, %25 : vector<1x128xf32>
      %c0_17 = arith.constant 0 : index
      %c0_18 = arith.constant 0 : index
      %27 = vector.load %arg10[%c0_17, %c0_18] : memref<1x128xf32, #tpu.memory_space<vmem>>, vector<1x128xf32>
      tpu.vector_store %arg10[%c0_17, %c0_18], %26 {strides = array<i32>} : memref<1x128xf32, #tpu.memory_space<vmem>>, vector<1x128xf32>,
      %c2_i32 = arith.constant 2 : i32
      %28 = arith.cmpi eq, %arg1, %c2_i32 : i32
      %29 = arith.extui %28 : i1 to i32
      %c0_i32_19 = arith.constant 0 : i32
      %30 = arith.cmpi ne, %29, %c0_i32_19 : i32
      scf.if %30 {
        %c0_20 = arith.constant 0 : index
        %c0_21 = arith.constant 0 : index
        %31 = vector.load %arg9[%c0_20, %c0_21] : memref<1x128xf32, #tpu.memory_space<vmem>>, vector<1x128xf32>
        %cst_22 = arith.constant 2.500000e-02 : f32
        %32 = vector.broadcast %cst_22 : f32 to vector<1x128xf32>
        %33 = arith.mulf %31, %32 : vector<1x128xf32>
        %c0_23 = arith.constant 0 : index
        %c0_24 = arith.constant 0 : index
        %34 = vector.load %arg10[%c0_23, %c0_24] : memref<1x128xf32, #tpu.memory_space<vmem>>, vector<1x128xf32>
        %cst_25 = arith.constant 2.500000e-02 : f32
        %35 = vector.broadcast %cst_25 : f32 to vector<1x128xf32>
        %36 = arith.mulf %34, %35 : vector<1x128xf32>
        %37 = arith.mulf %33, %33 : vector<1x128xf32>
        %38 = arith.subf %36, %37 : vector<1x128xf32>
        %cst_26 = arith.constant 0.000000e+00 : f32
        %39 = vector.broadcast %cst_26 : f32 to vector<1x128xf32>
        %40 = arith.maximumf %38, %39 : vector<1x128xf32>
        %c0_27 = arith.constant 0 : index
        %c0_28 = arith.constant 0 : index
        %41 = vector.load %arg4[%c0_27, %c0_28] : memref<1x128xf32, #tpu.memory_space<vmem>>, vector<1x128xf32>
        %cst_29 = arith.constant 9.99999974E-6 : f32
        %42 = vector.broadcast %cst_29 : f32 to vector<1x128xf32>
        %43 = arith.addf %40, %42 : vector<1x128xf32>
        %44 = math.rsqrt %43 : vector<1x128xf32>
        %45 = arith.mulf %41, %44 : vector<1x128xf32>
        %c0_30 = arith.constant 0 : index
        %c0_31 = arith.constant 0 : index
        %46 = vector.load %arg11[%c0_30, %c0_31] : memref<1x128xf32, #tpu.memory_space<vmem>>, vector<1x128xf32>
        tpu.vector_store %arg11[%c0_30, %c0_31], %45 {strides = array<i32>} : memref<1x128xf32, #tpu.memory_space<vmem>>, vector<1x128xf32>,
        %c0_32 = arith.constant 0 : index
        %c0_33 = arith.constant 0 : index
        %47 = vector.load %arg5[%c0_32, %c0_33] : memref<1x128xf32, #tpu.memory_space<vmem>>, vector<1x128xf32>
        %48 = arith.mulf %33, %45 : vector<1x128xf32>
        %49 = arith.subf %47, %48 : vector<1x128xf32>
        %c0_34 = arith.constant 0 : index
        %c0_35 = arith.constant 0 : index
        %50 = vector.load %arg12[%c0_34, %c0_35] : memref<1x128xf32, #tpu.memory_space<vmem>>, vector<1x128xf32>
        tpu.vector_store %arg12[%c0_34, %c0_35], %49 {strides = array<i32>} : memref<1x128xf32, #tpu.memory_space<vmem>>, vector<1x128xf32>,
      } else {
      }
    } else {
    }
    %c1_i32 = arith.constant 1 : i32
    %3 = arith.cmpi eq, %arg0, %c1_i32 : i32
    %4 = arith.extui %3 : i1 to i32
    %c0_i32_1 = arith.constant 0 : i32
    %5 = arith.cmpi ne, %4, %c0_i32_1 : i32
    scf.if %5 {
      %6 = arith.index_cast %arg1 : i32 to index
      %c0 = arith.constant 0 : index
      %c0_2 = arith.constant 0 : index
      %7 = vector.load %arg13[%6, %c0, %c0_2] : memref<3x16x128xbf16, #tpu.memory_space<vmem>>, vector<1x16x128xbf16>
      %8 = vector.shape_cast %7 : vector<1x16x128xbf16> to vector<16x128xbf16>
      %9 = arith.extf %8 : vector<16x128xbf16> to vector<16x128xf32>
      %c0_3 = arith.constant 0 : index
      %c0_4 = arith.constant 0 : index
      %10 = vector.load %arg11[%c0_3, %c0_4] : memref<1x128xf32, #tpu.memory_space<vmem>>, vector<1x128xf32>
      %11 = vector.broadcast %10 : vector<1x128xf32> to vector<16x128xf32>
      %12 = arith.mulf %9, %11 : vector<16x128xf32>
      %c0_5 = arith.constant 0 : index
      %c0_6 = arith.constant 0 : index
      %13 = vector.load %arg12[%c0_5, %c0_6] : memref<1x128xf32, #tpu.memory_space<vmem>>, vector<1x128xf32>
      %14 = vector.broadcast %13 : vector<1x128xf32> to vector<16x128xf32>
      %15 = arith.addf %12, %14 : vector<16x128xf32>
      %cst = arith.constant 0.00999999977 : f32
      %16 = vector.broadcast %cst : f32 to vector<16x128xf32>
      %17 = arith.mulf %16, %15 : vector<16x128xf32>
      %18 = arith.maximumf %15, %17 : vector<16x128xf32>
      %19 = arith.truncf %18 : vector<16x128xf32> to vector<16x128xbf16>
      %c0_7 = arith.constant 0 : index
      %c0_8 = arith.constant 0 : index
      %20 = vector.load %arg6[%c0_7, %c0_8] : memref<128x128xbf16, #tpu.memory_space<vmem>>, vector<128x128xbf16>
      %cst_9 = arith.constant dense<0.000000e+00> : vector<16x128xf32>
      %21 = tpu.matmul %19, %20, %cst_9 {dimension_numbers = #tpu.dot_dimension_numbers<[1], [0], [0], [1], [0, 0, 1, 1], [], []>} : vector<16x128xbf16>, vector<128x128xbf16>, vector<16x128xf32> -> vector<16x128xf32>
      %c0_10 = arith.constant 0 : index
      %c0_11 = arith.constant 0 : index
      %22 = vector.load %arg7[%c0_10, %c0_11] : memref<1x128xf32, #tpu.memory_space<vmem>>, vector<1x128xf32>
      %23 = vector.broadcast %22 : vector<1x128xf32> to vector<16x128xf32>
      %24 = arith.addf %21, %23 : vector<16x128xf32>
      %c0_12 = arith.constant 0 : index
      %c0_13 = arith.constant 0 : index
      %25 = vector.load %arg8[%c0_12, %c0_13] : memref<16x128xf32, #tpu.memory_space<vmem>>, vector<16x128xf32>
      tpu.vector_store %arg8[%c0_12, %c0_13], %24 {strides = array<i32>} : memref<16x128xf32, #tpu.memory_space<vmem>>, vector<16x128xf32>,
    } else {
    }
    return
  }
  func.func @transform_0(%arg0: i32, %arg1: i32) -> (i32, i32) {
    %c1_i32 = arith.constant 1 : i32
    %0 = arith.subi %c1_i32, %arg0 : i32
    %1 = arith.muli %arg1, %0 : i32
    %c0_i32 = arith.constant 0 : i32
    %c0_i32_0 = arith.constant 0 : i32
    return %1, %c0_i32 : i32, i32
  }
  func.func @transform_1(%arg0: i32, %arg1: i32) -> (i32, i32) {
    %c0_i32 = arith.constant 0 : i32
    %c0_i32_0 = arith.constant 0 : i32
    %c0_i32_1 = arith.constant 0 : i32
    return %c0_i32, %c0_i32_0 : i32, i32
  }
  func.func @transform_2(%arg0: i32, %arg1: i32) -> (i32, i32) {
    %c0_i32 = arith.constant 0 : i32
    %c0_i32_0 = arith.constant 0 : i32
    %c0_i32_1 = arith.constant 0 : i32
    return %c0_i32, %c0_i32_0 : i32, i32
  }
  func.func @transform_3(%arg0: i32, %arg1: i32) -> (i32, i32) {
    %c0_i32 = arith.constant 0 : i32
    %c0_i32_0 = arith.constant 0 : i32
    %c0_i32_1 = arith.constant 0 : i32
    return %c0_i32, %c0_i32_0 : i32, i32
  }
  func.func @transform_4(%arg0: i32, %arg1: i32) -> (i32, i32) {
    %c0_i32 = arith.constant 0 : i32
    %c0_i32_0 = arith.constant 0 : i32
    %c0_i32_1 = arith.constant 0 : i32
    return %c0_i32, %c0_i32_0 : i32, i32
  }
  func.func @transform_5(%arg0: i32, %arg1: i32) -> (i32, i32) {
    %c0_i32 = arith.constant 0 : i32
    %c0_i32_0 = arith.constant 0 : i32
    %c0_i32_1 = arith.constant 0 : i32
    return %c0_i32, %c0_i32_0 : i32, i32
  }
  func.func @transform_6(%arg0: i32, %arg1: i32) -> (i32, i32) {
    %0 = arith.muli %arg1, %arg0 : i32
    %c0_i32 = arith.constant 0 : i32
    %c0_i32_0 = arith.constant 0 : i32
    return %0, %c0_i32 : i32, i32
  }
}

module attributes {stable_mosaic.version = 11 : i64} {
  func.func @_ae_kernel(%arg0: i32, %arg1: i32, %arg2: memref<16x128xbf16, #tpu.memory_space<vmem>>, %arg3: memref<128x128xbf16, #tpu.memory_space<vmem>>, %arg4: memref<1x128xf32, #tpu.memory_space<vmem>>, %arg5: memref<1x128xf32, #tpu.memory_space<vmem>>, %arg6: memref<128x128xbf16, #tpu.memory_space<vmem>>, %arg7: memref<1x128xf32, #tpu.memory_space<vmem>>, %arg8: memref<16x128xf32, #tpu.memory_space<vmem>>, %arg9: memref<1x128xf32, #tpu.memory_space<vmem>>, %arg10: memref<1x128xf32, #tpu.memory_space<vmem>>, %arg11: memref<1x128xf32, #tpu.memory_space<vmem>>, %arg12: memref<1x128xf32, #tpu.memory_space<vmem>>, %arg13: memref<3x16x128xbf16, #tpu.memory_space<vmem>>) attributes {dimension_semantics = [#tpu.dimension_semantics<arbitrary>, #tpu.dimension_semantics<arbitrary>], iteration_bounds = array<i64: 2, 3>, scalar_prefetch = 0 : i64, scratch_operands = 5 : i64, tpu.core_type = #tpu.core_type<tc>, window_params = [{transform_indices = @transform_0, window_bounds = array<i64: 16, 128>}, {pipeline_mode = #tpu.pipeline_mode<synchronous>, transform_indices = @transform_1, window_bounds = array<i64: 128, 128>}, {pipeline_mode = #tpu.pipeline_mode<synchronous>, transform_indices = @transform_2, window_bounds = array<i64: 1, 128>}, {pipeline_mode = #tpu.pipeline_mode<synchronous>, transform_indices = @transform_3, window_bounds = array<i64: 1, 128>}, {pipeline_mode = #tpu.pipeline_mode<synchronous>, transform_indices = @transform_4, window_bounds = array<i64: 128, 128>}, {pipeline_mode = #tpu.pipeline_mode<synchronous>, transform_indices = @transform_5, window_bounds = array<i64: 1, 128>}, {transform_indices = @transform_6, window_bounds = array<i64: 16, 128>}]} {
    %c0_i32 = arith.constant 0 : i32
    %0 = arith.cmpi eq, %arg0, %c0_i32 : i32
    %1 = arith.extui %0 : i1 to i32
    %c0_i32_0 = arith.constant 0 : i32
    %2 = arith.cmpi ne, %1, %c0_i32_0 : i32
    scf.if %2 {
      %c0 = arith.constant 0 : index
      %c0_2 = arith.constant 0 : index
      %6 = vector.load %arg2[%c0, %c0_2] : memref<16x128xbf16, #tpu.memory_space<vmem>>, vector<16x128xbf16>
      %c0_3 = arith.constant 0 : index
      %c0_4 = arith.constant 0 : index
      %7 = vector.load %arg3[%c0_3, %c0_4] : memref<128x128xbf16, #tpu.memory_space<vmem>>, vector<128x128xbf16>
      %cst = arith.constant dense<0.000000e+00> : vector<16x128xf32>
      %8 = tpu.matmul %6, %7, %cst {dimension_numbers = #tpu.dot_dimension_numbers<[1], [0], [0], [1], [0, 0, 1, 1], [], []>} : vector<16x128xbf16>, vector<128x128xbf16>, vector<16x128xf32> -> vector<16x128xf32>
      %9 = arith.truncf %8 : vector<16x128xf32> to vector<16x128xbf16>
      %10 = arith.index_cast %arg1 : i32 to index
      %c0_5 = arith.constant 0 : index
      %c0_6 = arith.constant 0 : index
      %11 = vector.load %arg13[%10, %c0_5, %c0_6] : memref<3x16x128xbf16, #tpu.memory_space<vmem>>, vector<1x16x128xbf16>
      %12 = vector.shape_cast %11 : vector<1x16x128xbf16> to vector<16x128xbf16>
      %13 = vector.shape_cast %9 : vector<16x128xbf16> to vector<1x16x128xbf16>
      tpu.vector_store %arg13[%10, %c0_5, %c0_6], %13 {strides = array<i32>} : memref<3x16x128xbf16, #tpu.memory_space<vmem>>, vector<1x16x128xbf16>,
      %c0_i32_7 = arith.constant 0 : i32
      %14 = arith.cmpi eq, %arg1, %c0_i32_7 : i32
      %15 = arith.extui %14 : i1 to i32
      %c0_i32_8 = arith.constant 0 : i32
      %16 = arith.cmpi ne, %15, %c0_i32_8 : i32
      scf.if %16 {
        %cst_20 = arith.constant 0.000000e+00 : f32
        %31 = vector.broadcast %cst_20 : f32 to vector<1x128xf32>
        %c0_21 = arith.constant 0 : index
        %c0_22 = arith.constant 0 : index
        %32 = vector.load %arg9[%c0_21, %c0_22] : memref<1x128xf32, #tpu.memory_space<vmem>>, vector<1x128xf32>
        tpu.vector_store %arg9[%c0_21, %c0_22], %31 {strides = array<i32>} : memref<1x128xf32, #tpu.memory_space<vmem>>, vector<1x128xf32>,
        %cst_23 = arith.constant 0.000000e+00 : f32
        %33 = vector.broadcast %cst_23 : f32 to vector<1x128xf32>
        %c0_24 = arith.constant 0 : index
        %c0_25 = arith.constant 0 : index
        %34 = vector.load %arg10[%c0_24, %c0_25] : memref<1x128xf32, #tpu.memory_space<vmem>>, vector<1x128xf32>
        tpu.vector_store %arg10[%c0_24, %c0_25], %33 {strides = array<i32>} : memref<1x128xf32, #tpu.memory_space<vmem>>, vector<1x128xf32>,
      } else {
      }
      %c0_9 = arith.constant 0 : index
      %c0_10 = arith.constant 0 : index
      %17 = vector.load %arg9[%c0_9, %c0_10] : memref<1x128xf32, #tpu.memory_space<vmem>>, vector<1x128xf32>
      %cst_11 = arith.constant dense<0.000000e+00> : vector<128xf32>
      %18 = vector.multi_reduction <add>, %8, %cst_11 [0] : vector<16x128xf32> to vector<128xf32>
      %19 = vector.shape_cast %18 : vector<128xf32> to vector<1x128xf32>
      %20 = arith.addf %17, %19 : vector<1x128xf32>
      %c0_12 = arith.constant 0 : index
      %c0_13 = arith.constant 0 : index
      %21 = vector.load %arg9[%c0_12, %c0_13] : memref<1x128xf32, #tpu.memory_space<vmem>>, vector<1x128xf32>
      tpu.vector_store %arg9[%c0_12, %c0_13], %20 {strides = array<i32>} : memref<1x128xf32, #tpu.memory_space<vmem>>, vector<1x128xf32>,
      %c0_14 = arith.constant 0 : index
      %c0_15 = arith.constant 0 : index
      %22 = vector.load %arg10[%c0_14, %c0_15] : memref<1x128xf32, #tpu.memory_space<vmem>>, vector<1x128xf32>
      %23 = arith.mulf %8, %8 : vector<16x128xf32>
      %cst_16 = arith.constant dense<0.000000e+00> : vector<128xf32>
      %24 = vector.multi_reduction <add>, %23, %cst_16 [0] : vector<16x128xf32> to vector<128xf32>
      %25 = vector.shape_cast %24 : vector<128xf32> to vector<1x128xf32>
      %26 = arith.addf %22, %25 : vector<1x128xf32>
      %c0_17 = arith.constant 0 : index
      %c0_18 = arith.constant 0 : index
      %27 = vector.load %arg10[%c0_17, %c0_18] : memref<1x128xf32, #tpu.memory_space<vmem>>, vector<1x128xf32>
      tpu.vector_store %arg10[%c0_17, %c0_18], %26 {strides = array<i32>} : memref<1x128xf32, #tpu.memory_space<vmem>>, vector<1x128xf32>,
      %c2_i32 = arith.constant 2 : i32
      %28 = arith.cmpi eq, %arg1, %c2_i32 : i32
      %29 = arith.extui %28 : i1 to i32
      %c0_i32_19 = arith.constant 0 : i32
      %30 = arith.cmpi ne, %29, %c0_i32_19 : i32
      scf.if %30 {
        %c0_20 = arith.constant 0 : index
        %c0_21 = arith.constant 0 : index
        %31 = vector.load %arg9[%c0_20, %c0_21] : memref<1x128xf32, #tpu.memory_space<vmem>>, vector<1x128xf32>
        %cst_22 = arith.constant 2.500000e-02 : f32
        %32 = vector.broadcast %cst_22 : f32 to vector<1x128xf32>
        %33 = arith.mulf %31, %32 : vector<1x128xf32>
        %c0_23 = arith.constant 0 : index
        %c0_24 = arith.constant 0 : index
        %34 = vector.load %arg10[%c0_23, %c0_24] : memref<1x128xf32, #tpu.memory_space<vmem>>, vector<1x128xf32>
        %cst_25 = arith.constant 2.500000e-02 : f32
        %35 = vector.broadcast %cst_25 : f32 to vector<1x128xf32>
        %36 = arith.mulf %34, %35 : vector<1x128xf32>
        %37 = arith.mulf %33, %33 : vector<1x128xf32>
        %38 = arith.subf %36, %37 : vector<1x128xf32>
        %cst_26 = arith.constant 0.000000e+00 : f32
        %39 = vector.broadcast %cst_26 : f32 to vector<1x128xf32>
        %40 = arith.maximumf %38, %39 : vector<1x128xf32>
        %c0_27 = arith.constant 0 : index
        %c0_28 = arith.constant 0 : index
        %41 = vector.load %arg4[%c0_27, %c0_28] : memref<1x128xf32, #tpu.memory_space<vmem>>, vector<1x128xf32>
        %cst_29 = arith.constant 9.99999974E-6 : f32
        %42 = vector.broadcast %cst_29 : f32 to vector<1x128xf32>
        %43 = arith.addf %40, %42 : vector<1x128xf32>
        %44 = math.rsqrt %43 : vector<1x128xf32>
        %45 = arith.mulf %41, %44 : vector<1x128xf32>
        %c0_30 = arith.constant 0 : index
        %c0_31 = arith.constant 0 : index
        %46 = vector.load %arg11[%c0_30, %c0_31] : memref<1x128xf32, #tpu.memory_space<vmem>>, vector<1x128xf32>
        tpu.vector_store %arg11[%c0_30, %c0_31], %45 {strides = array<i32>} : memref<1x128xf32, #tpu.memory_space<vmem>>, vector<1x128xf32>,
        %c0_32 = arith.constant 0 : index
        %c0_33 = arith.constant 0 : index
        %47 = vector.load %arg5[%c0_32, %c0_33] : memref<1x128xf32, #tpu.memory_space<vmem>>, vector<1x128xf32>
        %48 = arith.mulf %33, %45 : vector<1x128xf32>
        %49 = arith.subf %47, %48 : vector<1x128xf32>
        %c0_34 = arith.constant 0 : index
        %c0_35 = arith.constant 0 : index
        %50 = vector.load %arg12[%c0_34, %c0_35] : memref<1x128xf32, #tpu.memory_space<vmem>>, vector<1x128xf32>
        tpu.vector_store %arg12[%c0_34, %c0_35], %49 {strides = array<i32>} : memref<1x128xf32, #tpu.memory_space<vmem>>, vector<1x128xf32>,
      } else {
      }
    } else {
    }
    %c1_i32 = arith.constant 1 : i32
    %3 = arith.cmpi eq, %arg0, %c1_i32 : i32
    %4 = arith.extui %3 : i1 to i32
    %c0_i32_1 = arith.constant 0 : i32
    %5 = arith.cmpi ne, %4, %c0_i32_1 : i32
    scf.if %5 {
      %6 = arith.index_cast %arg1 : i32 to index
      %c0 = arith.constant 0 : index
      %c0_2 = arith.constant 0 : index
      %7 = vector.load %arg13[%6, %c0, %c0_2] : memref<3x16x128xbf16, #tpu.memory_space<vmem>>, vector<1x16x128xbf16>
      %8 = vector.shape_cast %7 : vector<1x16x128xbf16> to vector<16x128xbf16>
      %9 = arith.extf %8 : vector<16x128xbf16> to vector<16x128xf32>
      %c0_3 = arith.constant 0 : index
      %c0_4 = arith.constant 0 : index
      %10 = vector.load %arg11[%c0_3, %c0_4] : memref<1x128xf32, #tpu.memory_space<vmem>>, vector<1x128xf32>
      %11 = vector.broadcast %10 : vector<1x128xf32> to vector<16x128xf32>
      %12 = arith.mulf %9, %11 : vector<16x128xf32>
      %c0_5 = arith.constant 0 : index
      %c0_6 = arith.constant 0 : index
      %13 = vector.load %arg12[%c0_5, %c0_6] : memref<1x128xf32, #tpu.memory_space<vmem>>, vector<1x128xf32>
      %14 = vector.broadcast %13 : vector<1x128xf32> to vector<16x128xf32>
      %15 = arith.addf %12, %14 : vector<16x128xf32>
      %cst = arith.constant 0.00999999977 : f32
      %16 = vector.broadcast %cst : f32 to vector<16x128xf32>
      %17 = arith.mulf %16, %15 : vector<16x128xf32>
      %18 = arith.maximumf %15, %17 : vector<16x128xf32>
      %19 = arith.truncf %18 : vector<16x128xf32> to vector<16x128xbf16>
      %c0_7 = arith.constant 0 : index
      %c0_8 = arith.constant 0 : index
      %20 = vector.load %arg6[%c0_7, %c0_8] : memref<128x128xbf16, #tpu.memory_space<vmem>>, vector<128x128xbf16>
      %cst_9 = arith.constant dense<0.000000e+00> : vector<16x128xf32>
      %21 = tpu.matmul %19, %20, %cst_9 {dimension_numbers = #tpu.dot_dimension_numbers<[1], [0], [0], [1], [0, 0, 1, 1], [], []>} : vector<16x128xbf16>, vector<128x128xbf16>, vector<16x128xf32> -> vector<16x128xf32>
      %c0_10 = arith.constant 0 : index
      %c0_11 = arith.constant 0 : index
      %22 = vector.load %arg7[%c0_10, %c0_11] : memref<1x128xf32, #tpu.memory_space<vmem>>, vector<1x128xf32>
      %23 = vector.broadcast %22 : vector<1x128xf32> to vector<16x128xf32>
      %24 = arith.addf %21, %23 : vector<16x128xf32>
      %c0_12 = arith.constant 0 : index
      %c0_13 = arith.constant 0 : index
      %25 = vector.load %arg8[%c0_12, %c0_13] : memref<16x128xf32, #tpu.memory_space<vmem>>, vector<16x128xf32>
      tpu.vector_store %arg8[%c0_12, %c0_13], %24 {strides = array<i32>} : memref<16x128xf32, #tpu.memory_space<vmem>>, vector<16x128xf32>,
    } else {
    }
    return
  }
  func.func @transform_0(%arg0: i32, %arg1: i32) -> (i32, i32) {
    %c1_i32 = arith.constant 1 : i32
    %0 = arith.subi %c1_i32, %arg0 : i32
    %1 = arith.muli %arg1, %0 : i32
    %c0_i32 = arith.constant 0 : i32
    %c0_i32_0 = arith.constant 0 : i32
    return %1, %c0_i32 : i32, i32
  }
  func.func @transform_1(%arg0: i32, %arg1: i32) -> (i32, i32) {
    %c0_i32 = arith.constant 0 : i32
    %c0_i32_0 = arith.constant 0 : i32
    %c0_i32_1 = arith.constant 0 : i32
    return %c0_i32, %c0_i32_0 : i32, i32
  }
  func.func @transform_2(%arg0: i32, %arg1: i32) -> (i32, i32) {
    %c0_i32 = arith.constant 0 : i32
    %c0_i32_0 = arith.constant 0 : i32
    %c0_i32_1 = arith.constant 0 : i32
    return %c0_i32, %c0_i32_0 : i32, i32
  }
  func.func @transform_3(%arg0: i32, %arg1: i32) -> (i32, i32) {
    %c0_i32 = arith.constant 0 : i32
    %c0_i32_0 = arith.constant 0 : i32
    %c0_i32_1 = arith.constant 0 : i32
    return %c0_i32, %c0_i32_0 : i32, i32
  }
  func.func @transform_4(%arg0: i32, %arg1: i32) -> (i32, i32) {
    %c0_i32 = arith.constant 0 : i32
    %c0_i32_0 = arith.constant 0 : i32
    %c0_i32_1 = arith.constant 0 : i32
    return %c0_i32, %c0_i32_0 : i32, i32
  }
  func.func @transform_5(%arg0: i32, %arg1: i32) -> (i32, i32) {
    %c0_i32 = arith.constant 0 : i32
    %c0_i32_0 = arith.constant 0 : i32
    %c0_i32_1 = arith.constant 0 : i32
    return %c0_i32, %c0_i32_0 : i32, i32
  }
  func.func @transform_6(%arg0: i32, %arg1: i32) -> (i32, i32) {
    %0 = arith.muli %arg1, %arg0 : i32
    %c0_i32 = arith.constant 0 : i32
    %c0_i32_0 = arith.constant 0 : i32
    return %0, %c0_i32 : i32, i32
  }
}

</mosaic_0001>

<llo_original>
// kernel: tpu_custom_call.1
$region0: #{tpu_custom_call.1}
  #allocation0 [shape = 'u32[]', space=smem, size = 0x4, offset = 0x4, fixed_abs, tag = 'smem constant byte address 0x4 - core index']
  #allocation1 [shape = 'u32[72,128]{1,0:T(1,128)}', space=vmem, size = 0x9000, scoped, tag = 'internal scratch']
  #allocation2 [shape = 'f32[1,128]{1,0:T(1,128)}', space=vmem, size = 0x200, scoped, tag = 'scratch operand']
  #allocation3 [shape = 'f32[1,128]{1,0:T(1,128)}', space=vmem, size = 0x200, scoped, tag = 'scratch operand']
  #allocation4 [shape = 'f32[1,128]{1,0:T(1,128)}', space=vmem, size = 0x200, scoped, tag = 'scratch operand']
  #allocation5 [shape = 'f32[1,128]{1,0:T(1,128)}', space=vmem, size = 0x200, scoped, tag = 'scratch operand']
  #allocation6 [shape = 'bf16[3,16,128]{2,1,0:T(8,128)(2,1)}', space=vmem, size = 0x3000, scoped, tag = 'scratch operand']
  %s0 = inlined_call_operand.hbm [shape: bf16[48,128], index: 0, kind: input, shape index: {}]
  %s1 = inlined_call_operand.hbm [shape: bf16[128,128], index: 1, kind: input, shape index: {}]
  %s2 = inlined_call_operand.vmem [shape: f32[1,128], index: 2, kind: input, shape index: {}]
  %s3 = inlined_call_operand.vmem [shape: f32[1,128], index: 3, kind: input, shape index: {}]
  %s4 = inlined_call_operand.hbm [shape: bf16[128,128], index: 4, kind: input, shape index: {}]
  %s5 = inlined_call_operand.vmem [shape: f32[1,128], index: 5, kind: input, shape index: {}]
  %s6 = inlined_call_operand.hbm [shape: f32[48,128], index: 6, kind: output, shape index: {}]
  %s7 = sld [smem:[#allocation0]]
  $region85: #{tpu_custom_call.1} parent=0
    _
  %s9 = ssub.s32 1, %s7
  %s10 = scalar_select 0, %s9, %s7
  $region1: #{tpu_custom_call.1} parent=0
    #allocation7 [shape = 'u8[8192]{0}', space=vmem, size = 0x2000, scoped, tag = 'input window, operand 0']
    #allocation8 [shape = 's32[2]{0}', space=sflag, size = 0x8, scoped, tag = 'scoped memory for tpu_custom_call.1']
    #allocation9 [shape = 's32[2]{0}', space=sflag, size = 0x8, scoped, tag = 'scoped memory for tpu_custom_call.1']
    #allocation10 [shape = 'u8[32768]{0}', space=vmem, size = 0x8000, scoped, tag = 'input window, operand 1, single buffered']
    #allocation11 [shape = 's32[1]{0}', space=sflag, size = 0x4, scoped, tag = 'scoped memory for tpu_custom_call.1']
    #allocation12 [shape = 'u8[32768]{0}', space=vmem, size = 0x8000, scoped, tag = 'input window, operand 4, single buffered']
    #allocation13 [shape = 'u8[16384]{0}', space=vmem, size = 0x4000, scoped, tag = 'output window, operand 0']
    %11 = vsyncpa [#allocation8], 0
    %s12 = scalar_lea.sflag [#allocation8], 1
    %13 = vsyncpa %s12, 0
    %14 = vsyncpa [#allocation11], 0
    %15 = vsyncpa [#allocation9], 0
    %s16 = scalar_lea.sflag [#allocation9], 1
    %17 = vsyncpa %s16, 0
    loop: start=0, step=1, limit=8
    $region2: #{tpu_custom_call.1} parent=1 // loop_pre_header
      _
    $region3: #{tpu_custom_call.1} parent=1 // loop_header
      %s19 = sphi 0, %s23
      %p20 = scmp.ge.s32.totalorder %s19, 8
      %s26 = sphi 0, %s38
      %s27 = sphi 0, %s34
      %s28 = sphi 0, %s26
      %s29 = sphi 0, %s27
      %s30 = sphi 0, %s28
      %s31 = sphi 0, %s29
      %s45 = sphi 0, %s47
      %s48 = sphi 0, %s45
      %s49 = sphi 0, %s48
      %s65 = sphi 0, %s49
      %s69 = sphi 0, %s69
      %s71 = sphi 0, %s69
      %s72 = sphi 0, %s71
      %s86 = sphi 0, %s72
      %s90 = sphi 0, %s90
      %s92 = sphi 0, %s90
      %s93 = sphi 0, %s92
      %s107 = sphi 0, %s93
      %s111 = sphi 0, %s111
      %s113 = sphi 0, %s111
      %s114 = sphi 0, %s113
      %s128 = sphi 0, %s114
      %s132 = sphi 0, %s132
      %s134 = sphi 0, %s132
      %s135 = sphi 0, %s134
      %s149 = sphi 0, %s135
      %s153 = sphi 0, %s153
      %s155 = sphi 0, %s153
      %s156 = sphi 0, %s155
      %s170 = sphi 0, %s156
      %s178 = sphi 0, %s180
      %s181 = sphi 0, %s178
      %s182 = sphi 0, %s181
      %s198 = sphi 0, %s182
    $region4: #{tpu_custom_call.1} parent=1 // loop_header_branch
      %22 = sbr.rel (%p20) target = $region8
    $region5: #{tpu_custom_call.1} parent=1 // loop_body
      %s24 = ssub.s32 %s19, 1
      %s25 = ssub.s32 %s19, 2
      %s32 = sadd.s32 1, %s27
      %p33 = scmp.ge.s32.totalorder %s32, 3
      %s34 = scalar_select %p33, 0, %s32
      %s35 = sadd.s32 1, %s26
      %s36 = scalar_select %p33, %s35, %s26
      %p37 = scmp.ge.s32.totalorder %s36, 2
      %s38 = scalar_select %p37, 0, %s36
      %s39 = ssub.s32 1, %s26
      %s40 = smul.u32 %s27, %s39
      %s41 = ssub.s32 1, %s38
      %s42 = smul.u32 %s34, %s41
      %s43 = ssub.s32 %s40, %s42
      %p44 = scmp.eq.s32.totalorder %s43, 0
      %s46 = sadd.s32 %s45, 1
      %s47 = scalar_select %p44, %s45, %s46
      %p50 = pneg %p44
      %p51 = scmp.eq.s32.totalorder %s19, 5
      %p52 = por %p50, %p51
      %p53 = scmp.ne.s32.totalorder %s45, %s48
      %p54 = scmp.eq.s32.totalorder %s19, 0
      %p55 = por %p53, %p54
      %p56 = scmp.ne.s32.totalorder %s45, %s48
      %p57 = scmp.eq.s32.totalorder %s24, 5
      %p58 = por %p56, %p57
      %p59 = scmp.ne.s32.totalorder %s48, %s49
      %p60 = scmp.eq.s32.totalorder %s24, 0
      %p61 = por %p59, %p60
      %p62 = scmp.ne.s32.totalorder %s48, %s49
      %p63 = scmp.eq.s32.totalorder %s25, 5
      %p64 = por %p62, %p63
      %p66 = scmp.ne.s32.totalorder %s49, %s65
      %p67 = scmp.eq.s32.totalorder %s25, 0
      %p68 = por %p66, %p67
      %s70 = sadd.s32 %s69, 1
      %p73 = scmp.eq.s32.totalorder %s19, 5
      %p74 = scmp.ne.s32.totalorder %s69, %s71
      %p75 = scmp.eq.s32.totalorder %s19, 0
      %p76 = por %p74, %p75
      %p77 = scmp.ne.s32.totalorder %s69, %s71
      %p78 = scmp.eq.s32.totalorder %s24, 5
      %p79 = por %p77, %p78
      %p80 = scmp.ne.s32.totalorder %s71, %s72
      %p81 = scmp.eq.s32.totalorder %s24, 0
      %p82 = por %p80, %p81
      %p83 = scmp.ne.s32.totalorder %s71, %s72
      %p84 = scmp.eq.s32.totalorder %s25, 5
      %p85 = por %p83, %p84
      %p87 = scmp.ne.s32.totalorder %s72, %s86
      %p88 = scmp.eq.s32.totalorder %s25, 0
      %p89 = por %p87, %p88
      %s91 = sadd.s32 %s90, 1
      %p94 = scmp.eq.s32.totalorder %s19, 5
      %p95 = scmp.ne.s32.totalorder %s90, %s92
      %p96 = scmp.eq.s32.totalorder %s19, 0
      %p97 = por %p95, %p96
      %p98 = scmp.ne.s32.totalorder %s90, %s92
      %p99 = scmp.eq.s32.totalorder %s24, 5
      %p100 = por %p98, %p99
      %p101 = scmp.ne.s32.totalorder %s92, %s93
      %p102 = scmp.eq.s32.totalorder %s24, 0
      %p103 = por %p101, %p102
      %p104 = scmp.ne.s32.totalorder %s92, %s93
      %p105 = scmp.eq.s32.totalorder %s25, 5
      %p106 = por %p104, %p105
      %p108 = scmp.ne.s32.totalorder %s93, %s107
      %p109 = scmp.eq.s32.totalorder %s25, 0
      %p110 = por %p108, %p109
      %s112 = sadd.s32 %s111, 1
      %p115 = scmp.eq.s32.totalorder %s19, 5
      %p116 = scmp.ne.s32.totalorder %s111, %s113
      %p117 = scmp.eq.s32.totalorder %s19, 0
      %p118 = por %p116, %p117
      %p119 = scmp.ne.s32.totalorder %s111, %s113
      %p120 = scmp.eq.s32.totalorder %s24, 5
      %p121 = por %p119, %p120
      %p122 = scmp.ne.s32.totalorder %s113, %s114
      %p123 = scmp.eq.s32.totalorder %s24, 0
      %p124 = por %p122, %p123
      %p125 = scmp.ne.s32.totalorder %s113, %s114
      %p126 = scmp.eq.s32.totalorder %s25, 5
      %p127 = por %p125, %p126
      %p129 = scmp.ne.s32.totalorder %s114, %s128
      %p130 = scmp.eq.s32.totalorder %s25, 0
      %p131 = por %p129, %p130
      %s133 = sadd.s32 %s132, 1
      %p136 = scmp.eq.s32.totalorder %s19, 5
      %p137 = scmp.ne.s32.totalorder %s132, %s134
      %p138 = scmp.eq.s32.totalorder %s19, 0
      %p139 = por %p137, %p138
      %p140 = scmp.ne.s32.totalorder %s132, %s134
      %p141 = scmp.eq.s32.totalorder %s24, 5
      %p142 = por %p140, %p141
      %p143 = scmp.ne.s32.totalorder %s134, %s135
      %p144 = scmp.eq.s32.totalorder %s24, 0
      %p145 = por %p143, %p144
      %p146 = scmp.ne.s32.totalorder %s134, %s135
      %p147 = scmp.eq.s32.totalorder %s25, 5
      %p148 = por %p146, %p147
      %p150 = scmp.ne.s32.totalorder %s135, %s149
      %p151 = scmp.eq.s32.totalorder %s25, 0
      %p152 = por %p150, %p151
      %s154 = sadd.s32 %s153, 1
      %p157 = scmp.eq.s32.totalorder %s19, 5
      %p158 = scmp.ne.s32.totalorder %s153, %s155
      %p159 = scmp.eq.s32.totalorder %s19, 0
      %p160 = por %p158, %p159
      %p161 = scmp.ne.s32.totalorder %s153, %s155
      %p162 = scmp.eq.s32.totalorder %s24, 5
      %p163 = por %p161, %p162
      %p164 = scmp.ne.s32.totalorder %s155, %s156
      %p165 = scmp.eq.s32.totalorder %s24, 0
      %p166 = por %p164, %p165
      %p167 = scmp.ne.s32.totalorder %s155, %s156
      %p168 = scmp.eq.s32.totalorder %s25, 5
      %p169 = por %p167, %p168
      %p171 = scmp.ne.s32.totalorder %s156, %s170
      %p172 = scmp.eq.s32.totalorder %s25, 0
      %p173 = por %p171, %p172
      %s174 = smul.u32 %s27, %s26
      %s175 = smul.u32 %s34, %s38
      %s176 = ssub.s32 %s174, %s175
      %p177 = scmp.eq.s32.totalorder %s176, 0
      %s179 = sadd.s32 %s178, 1
      %s180 = scalar_select %p177, %s178, %s179
      %p183 = pneg %p177
      %p184 = scmp.eq.s32.totalorder %s19, 5
      %p185 = por %p183, %p184
      %p186 = scmp.ne.s32.totalorder %s178, %s181
      %p187 = scmp.eq.s32.totalorder %s19, 0
      %p188 = por %p186, %p187
      %p189 = scmp.ne.s32.totalorder %s178, %s181
      %p190 = scmp.eq.s32.totalorder %s24, 5
      %p191 = por %p189, %p190
      %p192 = scmp.ne.s32.totalorder %s181, %s182
      %p193 = scmp.eq.s32.totalorder %s24, 0
      %p194 = por %p192, %p193
      %p195 = scmp.ne.s32.totalorder %s181, %s182
      %p196 = scmp.eq.s32.totalorder %s25, 5
      %p197 = por %p195, %p196
      %p199 = scmp.ne.s32.totalorder %s182, %s198
      %p200 = scmp.eq.s32.totalorder %s25, 0
      %p201 = por %p199, %p200
      %p202 = scmp.le.s32.totalorder 1, %s19
      %p203 = scmp.lt.s32.totalorder %s19, 7
      %p204 = pnand %p202, %p203
      %p205 = pneg %p204
      // Predicated region
      $region9: #{tpu_custom_call.1} parent=5 // pred_check
        _
      $region10: #{tpu_custom_call.1} parent=5 // pred_check_branch
        %207 = sbr.rel (%p204) target = $region12
      $region11: #{tpu_custom_call.1} parent=5 // pred_region
        %s208 = ssub.s32 %s19, 1
        // Predicated region
        $region13: #{tpu_custom_call.1} parent=11 // pred_check
          %p209 = pneg %p82
        $region14: #{tpu_custom_call.1} parent=11 // pred_check_branch
          %211 = sbr.rel (%p209) target = $region16
        $region15: #{tpu_custom_call.1} parent=11 // pred_region
          %213 = vsyncadd [#allocation11], 0
          %s214 = sshll.u32 %s1, 4
          %s215 = int_to_ptr.hbm [resolvable:$true] %s214
          %s216 = sshll.u32 [#allocation10], 4
          %s217 = int_to_ptr.vmem [resolvable:$true] %s216
          %222 = dma.hbm_to_vmem [thread:$0]  %s215, 1024, %s217, [#allocation11], 64, 64, 4
        $region16: #{tpu_custom_call.1} parent=11 // pred_fallthru
          _
        // Predicated region
        $region17: #{tpu_custom_call.1} parent=11 // pred_check
          %p223 = pneg %p103
        $region18: #{tpu_custom_call.1} parent=11 // pred_check_branch
          %225 = sbr.rel (%p223) target = $region20
        $region19: #{tpu_custom_call.1} parent=11 // pred_region
          _
        $region20: #{tpu_custom_call.1} parent=11 // pred_fallthru
          _
        // Predicated region
        $region21: #{tpu_custom_call.1} parent=11 // pred_check
          %p226 = pneg %p124
        $region22: #{tpu_custom_call.1} parent=11 // pred_check_branch
          %228 = sbr.rel (%p226) target = $region24
        $region23: #{tpu_custom_call.1} parent=11 // pred_region
          _
        $region24: #{tpu_custom_call.1} parent=11 // pred_fallthru
          _
        // Predicated region
        $region25: #{tpu_custom_call.1} parent=11 // pred_check
          %p229 = pneg %p145
        $region26: #{tpu_custom_call.1} parent=11 // pred_check_branch
          %231 = sbr.rel (%p229) target = $region28
        $region27: #{tpu_custom_call.1} parent=11 // pred_region
          %233 = vsyncadd [#allocation11], 0
          %s234 = sshll.u32 %s4, 4
          %s235 = int_to_ptr.hbm [resolvable:$true] %s234
          %s236 = sshll.u32 [#allocation12], 4
          %s237 = int_to_ptr.vmem [resolvable:$true] %s236
          %242 = dma.hbm_to_vmem [thread:$0]  %s235, 1024, %s237, [#allocation11], 64, 64, 4
        $region28: #{tpu_custom_call.1} parent=11 // pred_fallthru
          _
        // Predicated region
        $region29: #{tpu_custom_call.1} parent=11 // pred_check
          %p243 = pneg %p166
        $region30: #{tpu_custom_call.1} parent=11 // pred_check_branch
          %245 = sbr.rel (%p243) target = $region32
        $region31: #{tpu_custom_call.1} parent=11 // pred_region
          _
        $region32: #{tpu_custom_call.1} parent=11 // pred_fallthru
          _
      $region12: #{tpu_custom_call.1} parent=5 // pred_fallthru
        _
      %p246 = scmp.lt.s32.totalorder %s19, 6
      // Predicated region
      $region33: #{tpu_custom_call.1} parent=5 // pred_check
        %p247 = pneg %p246
      $region34: #{tpu_custom_call.1} parent=5 // pred_check_branch
        %249 = sbr.rel (%p247) target = $region36
      $region35: #{tpu_custom_call.1} parent=5 // pred_region
        // Predicated region
        $region37: #{tpu_custom_call.1} parent=35 // pred_check
          %p250 = pneg %p55
        $region38: #{tpu_custom_call.1} parent=35 // pred_check_branch
          %252 = sbr.rel (%p250) target = $region40
        $region39: #{tpu_custom_call.1} parent=35 // pred_region
          %s253 = sand.u32 %s45, 1
          %s254 = scalar_lea.sflag [#allocation8], %s253
          %s255 = sand.u32 %s45, 1
          %s256 = smul.addr %s255, 8
          %s257 = scalar_lea.vmem [#allocation7], %s256
          %s258 = ssub.s32 1, %s26
          %s259 = smul.u32 %s27, %s258
          %s260 = smul.u32 2, %s259
          %262 = vsyncadd %s254, 0
          %s263 = smul.addr %s260, 4
          %s264 = scalar_lea.hbm %s0, %s263
          %s265 = sshll.u32 %s264, 4
          %s266 = int_to_ptr.hbm [resolvable:$true] %s265
          %s267 = sshll.u32 %s257, 4
          %s268 = int_to_ptr.vmem [resolvable:$true] %s267
          %273 = dma.hbm_to_vmem [thread:$0]  %s266, 128, %s268, %s254, 64, 64, 4
        $region40: #{tpu_custom_call.1} parent=35 // pred_fallthru
          _
      $region36: #{tpu_custom_call.1} parent=5 // pred_fallthru
        _
      %p274 = scmp.le.s32.totalorder 1, %s19
      %p275 = scmp.lt.s32.totalorder %s19, 7
      %p276 = pnand %p274, %p275
      %p277 = pneg %p276
      // Predicated region
      $region41: #{tpu_custom_call.1} parent=5 // pred_check
        _
      $region42: #{tpu_custom_call.1} parent=5 // pred_check_branch
        %279 = sbr.rel (%p276) target = $region44
      $region43: #{tpu_custom_call.1} parent=5 // pred_region
        %s280 = ssub.s32 %s19, 1
        %s281 = sand.u32 %s48, 1
        %s282 = scalar_lea.sflag [#allocation8], %s281
        %s283 = sand.u32 %s48, 1
        %s284 = smul.addr %s283, 8
        %s285 = scalar_lea.vmem [#allocation7], %s284
        // Predicated region
        $region45: #{tpu_custom_call.1} parent=43 // pred_check
          %p286 = pneg %p61
        $region46: #{tpu_custom_call.1} parent=43 // pred_check_branch
          %288 = sbr.rel (%p286) target = $region48
        $region47: #{tpu_custom_call.1} parent=43 // pred_region
          %290 = dma.done %s282, 128
        $region48: #{tpu_custom_call.1} parent=43 // pred_fallthru
          _
        // Predicated region
        $region49: #{tpu_custom_call.1} parent=43 // pred_check
          %p291 = pneg %p82
        $region50: #{tpu_custom_call.1} parent=43 // pred_check_branch
          %293 = sbr.rel (%p291) target = $region52
        $region51: #{tpu_custom_call.1} parent=43 // pred_region
          %295 = dma.done [#allocation11], 1024
        $region52: #{tpu_custom_call.1} parent=43 // pred_fallthru
          _
        // Predicated region
        $region53: #{tpu_custom_call.1} parent=43 // pred_check
          %p296 = pneg %p145
        $region54: #{tpu_custom_call.1} parent=43 // pred_check_branch
          %298 = sbr.rel (%p296) target = $region56
        $region55: #{tpu_custom_call.1} parent=43 // pred_region
          %300 = dma.done [#allocation11], 1024
        $region56: #{tpu_custom_call.1} parent=43 // pred_fallthru
          _
        %s301 = sand.u32 %s48, 1
        %s302 = scalar_lea.sflag [#allocation8], %s301
        %s303 = sand.u32 %s48, 1
        %s304 = smul.addr %s303, 8
        %s305 = scalar_lea.vmem [#allocation7], %s304
        %p306 = pneg %p61
        %p307 = pneg %p58
        %p308 = pneg %p82
        %p309 = pneg %p79
        %p310 = pneg %p103
        %p311 = pneg %p100
        %p312 = pneg %p124
        %p313 = pneg %p121
        %p314 = pneg %p145
        %p315 = pneg %p142
        %p316 = pneg %p166
        %p317 = pneg %p163
        %p318 = pneg %p194
        %p319 = pneg %p191
        %s320 = sand.u32 %s181, 1
        %s321 = scalar_lea.sflag [#allocation9], %s320
        %s322 = sand.u32 %s181, 1
        %s323 = smul.addr %s322, 16
        %s324 = scalar_lea.vmem [#allocation13], %s323
        %s325 = ssub.s32 1, %s28
        %s326 = smul.u32 %s29, %s325
        %s327 = smul.u32 2, %s326
        %s328 = smul.u32 %s29, %s28
        %s329 = smul.u32 2, %s328
        %p330 = scmp.eq.s32.totalorder %s28, 0
        // Predicated region
        $region57: #{tpu_custom_call.1} parent=43 // pred_check
          %p331 = pneg %p330
        $region58: #{tpu_custom_call.1} parent=43 // pred_check_branch
          %333 = sbr.rel (%p331) target = $region60
        $region59: #{tpu_custom_call.1} parent=43 // pred_region
          %v334 = vld [vmem:[%s285] sm:$0xf]
          %v335 = vld [vmem:[%s285 + $0x4] sm:$0xf]
          %v336 = vld [vmem:[#allocation10] sm:$0xf]
          %v337 = vld [vmem:[#allocation10 + $0x4] sm:$0xf]
          %v338 = vld [vmem:[#allocation10 + $0x8] sm:$0xf]
          %v339 = vld [vmem:[#allocation10 + $0xc] sm:$0xf]
          %v340 = vld [vmem:[#allocation10 + $0x10] sm:$0xf]
          %v341 = vld [vmem:[#allocation10 + $0x14] sm:$0xf]
          %v342 = vld [vmem:[#allocation10 + $0x18] sm:$0xf]
          %v343 = vld [vmem:[#allocation10 + $0x1c] sm:$0xf]
          %v344 = vld [vmem:[#allocation10 + $0x20] sm:$0xf]
          %v345 = vld [vmem:[#allocation10 + $0x24] sm:$0xf]
          %v346 = vld [vmem:[#allocation10 + $0x28] sm:$0xf]
          %v347 = vld [vmem:[#allocation10 + $0x2c] sm:$0xf]
          %v348 = vld [vmem:[#allocation10 + $0x30] sm:$0xf]
          %v349 = vld [vmem:[#allocation10 + $0x34] sm:$0xf]
          %v350 = vld [vmem:[#allocation10 + $0x38] sm:$0xf]
          %v351 = vld [vmem:[#allocation10 + $0x3c] sm:$0xf]
          %v354 = vunpack.c.l.b16 %v334
          %v355 = vunpack.c.l.b16 %v335
          %v356 = vpack.c.b16 %v355, %v354
          %v374 = vunpack.c.l.b16 %v336
          %v375 = vunpack.c.l.b16 %v337
          %v376 = vunpack.c.l.b16 %v338
          %v377 = vunpack.c.l.b16 %v339
          %v378 = vunpack.c.l.b16 %v340
          %v379 = vunpack.c.l.b16 %v341
          %v380 = vunpack.c.l.b16 %v342
          %v381 = vunpack.c.l.b16 %v343
          %v382 = vunpack.c.l.b16 %v344
          %v383 = vunpack.c.l.b16 %v345
          %v384 = vunpack.c.l.b16 %v346
          %v385 = vunpack.c.l.b16 %v347
          %v386 = vunpack.c.l.b16 %v348
          %v387 = vunpack.c.l.b16 %v349
          %v388 = vunpack.c.l.b16 %v350
          %v389 = vunpack.c.l.b16 %v351
          %v390 = vpack.c.b16 %v375, %v374
          %v391 = vpack.c.b16 %v377, %v376
          %v392 = vpack.c.b16 %v379, %v378
          %v393 = vpack.c.b16 %v381, %v380
          %v394 = vpack.c.b16 %v383, %v382
          %v395 = vpack.c.b16 %v385, %v384
          %v396 = vpack.c.b16 %v387, %v386
          %v397 = vpack.c.b16 %v389, %v388
          %406 = vmatpush.bf16.msra.mxu0 %v397
          %407 = vmatpush.bf16.msra.mxu0 %v396
          %408 = vmatpush.bf16.msra.mxu0 %v395
          %409 = vmatpush.bf16.msra.mxu0 %v394
          %410 = vmatpush.bf16.msra.mxu0 %v393
          %411 = vmatpush.bf16.msra.mxu0 %v392
          %412 = vmatpush.bf16.msra.mxu0 %v391
          %413 = vmatpush.bf16.msra.mxu0 %v390
          %414 = vmatmul.bf16.gmra.mxu0 %v356
          %v415 = vpop.f32.mrf.mxu0
          %v416 = vadd.f32 0.0, %v415
          %v417 = vpop.f32.mrf.mxu0
          %v418 = vadd.f32 0.0, %v417
          %419 = vdwg.mxu0
          %v420 = vpack.c.bf16 %v416, %v416
          %v421 = vpack.c.bf16 %v418, %v418
          %s422 = smul.u32 %s29, 2
          %s423 = smul.addr %s422, 4
          %s424 = scalar_lea.vmem [#allocation6], %s423
          %425 = vst [vmem:[%s424] sm:$0xf] %v420
          %426 = vst [vmem:[%s424 + $0x4] sm:$0xf] %v421
          %p427 = scmp.eq.s32.totalorder %s29, 0
          // Predicated region
          $region61: #{tpu_custom_call.1} parent=59 // pred_check
            %p428 = pneg %p427
          $region62: #{tpu_custom_call.1} parent=59 // pred_check_branch
            %430 = sbr.rel (%p428) target = $region64
          $region63: #{tpu_custom_call.1} parent=59 // pred_region
            %431 = vst [vmem:[#allocation2] sm:$0x1] 0.0
            %432 = vst [vmem:[#allocation3] sm:$0x1] 0.0
          $region64: #{tpu_custom_call.1} parent=59 // pred_fallthru
            _
          %v433 = vld [vmem:[#allocation2] sm:$0x1]
          %v434 = vadd.f32 %v416, %v418
          %v435 = vrot.slane %v434, 4
          %v436 = vadd.f32 %v434, %v435
          %v437 = vrot.slane %v436, 2
          %v438 = vadd.f32 %v436, %v437
          %v439 = vrot.slane %v438, 1
          %v440 = vadd.f32 %v438, %v439
          %v441 = vadd.f32 %v433, %v440
          %442 = vst [vmem:[#allocation2] sm:$0x1] %v441
          %v443 = vld [vmem:[#allocation3] sm:$0x1]
          %v444 = vmul.f32 %v416, %v416
          %v445 = vmul.f32 %v418, %v418
          %v446 = vadd.f32 %v444, %v445
          %v447 = vrot.slane %v446, 4
          %v448 = vadd.f32 %v446, %v447
          %v449 = vrot.slane %v448, 2
          %v450 = vadd.f32 %v448, %v449
          %v451 = vrot.slane %v450, 1
          %v452 = vadd.f32 %v450, %v451
          %v453 = vadd.f32 %v443, %v452
          %454 = vst [vmem:[#allocation3] sm:$0x1] %v453
          %p455 = scmp.eq.s32.totalorder %s29, 2
          // Predicated region
          $region65: #{tpu_custom_call.1} parent=59 // pred_check
            %p456 = pneg %p455
          $region66: #{tpu_custom_call.1} parent=59 // pred_check_branch
            %458 = sbr.rel (%p456) target = $region68
          $region67: #{tpu_custom_call.1} parent=59 // pred_region
            %v459 = vld [vmem:[#allocation2] sm:$0x1]
            %v460 = vmul.f32 %v459, 0.025
            %v461 = vld [vmem:[#allocation3] sm:$0x1]
            %v462 = vmul.f32 %v461, 0.025
            %v463 = vmul.f32 %v460, %v460
            %v464 = vsub.f32 %v462, %v463
            %v465 = vmax.f32 %v464, 0.0
            %v466 = vld [vmem:[%s2] sm:$0x1]
            %v467 = vadd.f32 %v465, 1e-05
            %v468 = vrsqrt.pop %v467
            %v469 = vmul.f32 %v468, %v467
            %v470 = vmul.f32 %v469, %v468
            %v471 = vmul.f32 0.5, %v470
            %v472 = vsub.f32 1.5, %v471
            %v473 = vmul.f32 %v468, %v472
            %vm474 = vweird.f32 %v467
            %vm475 = vweird.f32 %v468
            %vm476 = vmor %vm474, %vm475
            %v477 = vsel %vm476, %v468, %v473
            %v478 = vmul.f32 %v466, %v477
            %479 = vst [vmem:[#allocation4] sm:$0x1] %v478
            %v480 = vld [vmem:[%s3] sm:$0x1]
            %v481 = vmul.f32 %v460, %v478
            %v482 = vsub.f32 %v480, %v481
            %483 = vst [vmem:[#allocation5] sm:$0x1] %v482
          $region68: #{tpu_custom_call.1} parent=59 // pred_fallthru
            _
        $region60: #{tpu_custom_call.1} parent=43 // pred_fallthru
          _
        %p484 = scmp.eq.s32.totalorder %s28, 1
        // Predicated region
        $region69: #{tpu_custom_call.1} parent=43 // pred_check
          %p485 = pneg %p484
        $region70: #{tpu_custom_call.1} parent=43 // pred_check_branch
          %487 = sbr.rel (%p485) target = $region72
        $region71: #{tpu_custom_call.1} parent=43 // pred_region
          %s488 = smul.u32 %s29, 2
          %s489 = smul.addr %s488, 4
          %s490 = scalar_lea.vmem [#allocation6], %s489
          %v491 = vld [vmem:[%s490] sm:$0xf]
          %v492 = vld [vmem:[%s490 + $0x4] sm:$0xf]
          %v493 = vunpack.c.l.bf16 %v491
          %v494 = vunpack.c.l.bf16 %v492
          %v495 = vld [vmem:[#allocation4] sm:$0x1]
          %v497 = vperm.slane %v495, 0
          %v499 = vmul.f32 %v493, %v497
          %v500 = vmul.f32 %v494, %v497
          %v501 = vld [vmem:[#allocation5] sm:$0x1]
          %v503 = vperm.slane %v501, 0
          %v505 = vadd.f32 %v499, %v503
          %v506 = vadd.f32 %v500, %v503
          %v507 = vmul.f32 %v505, 0.01
          %v508 = vmul.f32 %v506, 0.01
          %v509 = vmax.f32 %v505, %v507
          %v510 = vmax.f32 %v506, %v508
          %v511 = vpack.c.bf16 %v510, %v509
          %v512 = vld [vmem:[#allocation12] sm:$0xf]
          %v513 = vld [vmem:[#allocation12 + $0x4] sm:$0xf]
          %v514 = vld [vmem:[#allocation12 + $0x8] sm:$0xf]
          %v515 = vld [vmem:[#allocation12 + $0xc] sm:$0xf]
          %v516 = vld [vmem:[#allocation12 + $0x10] sm:$0xf]
          %v517 = vld [vmem:[#allocation12 + $0x14] sm:$0xf]
          %v518 = vld [vmem:[#allocation12 + $0x18] sm:$0xf]
          %v519 = vld [vmem:[#allocation12 + $0x1c] sm:$0xf]
          %v520 = vld [vmem:[#allocation12 + $0x20] sm:$0xf]
          %v521 = vld [vmem:[#allocation12 + $0x24] sm:$0xf]
          %v522 = vld [vmem:[#allocation12 + $0x28] sm:$0xf]
          %v523 = vld [vmem:[#allocation12 + $0x2c] sm:$0xf]
          %v524 = vld [vmem:[#allocation12 + $0x30] sm:$0xf]
          %v525 = vld [vmem:[#allocation12 + $0x34] sm:$0xf]
          %v526 = vld [vmem:[#allocation12 + $0x38] sm:$0xf]
          %v527 = vld [vmem:[#allocation12 + $0x3c] sm:$0xf]
          %v528 = vld [vmem:[%s5] sm:$0x1]
          %v530 = vperm.slane %v528, 0
          %v548 = vunpack.c.l.b16 %v512
          %v549 = vunpack.c.l.b16 %v513
          %v550 = vunpack.c.l.b16 %v514
          %v551 = vunpack.c.l.b16 %v515
          %v552 = vunpack.c.l.b16 %v516
          %v553 = vunpack.c.l.b16 %v517
          %v554 = vunpack.c.l.b16 %v518
          %v555 = vunpack.c.l.b16 %v519
          %v556 = vunpack.c.l.b16 %v520
          %v557 = vunpack.c.l.b16 %v521
          %v558 = vunpack.c.l.b16 %v522
          %v559 = vunpack.c.l.b16 %v523
          %v560 = vunpack.c.l.b16 %v524
          %v561 = vunpack.c.l.b16 %v525
          %v562 = vunpack.c.l.b16 %v526
          %v563 = vunpack.c.l.b16 %v527
          %v564 = vpack.c.b16 %v549, %v548
          %v565 = vpack.c.b16 %v551, %v550
          %v566 = vpack.c.b16 %v553, %v552
          %v567 = vpack.c.b16 %v555, %v554
          %v568 = vpack.c.b16 %v557, %v556
          %v569 = vpack.c.b16 %v559, %v558
          %v570 = vpack.c.b16 %v561, %v560
          %v571 = vpack.c.b16 %v563, %v562
          %580 = vmatpush.bf16.msra.mxu0 %v571
          %581 = vmatpush.bf16.msra.mxu0 %v570
          %582 = vmatpush.bf16.msra.mxu0 %v569
          %583 = vmatpush.bf16.msra.mxu0 %v568
          %584 = vmatpush.bf16.msra.mxu0 %v567
          %585 = vmatpush.bf16.msra.mxu0 %v566
          %586 = vmatpush.bf16.msra.mxu0 %v565
          %587 = vmatpush.bf16.msra.mxu0 %v564
          %588 = vmatmul.bf16.gmra.mxu0 %v511
          %v589 = vpop.f32.mrf.mxu0
          %v590 = vadd.f32 %v530, %v589
          %v591 = vpop.f32.mrf.mxu0
          %v592 = vadd.f32 %v530, %v591
          %593 = vdwg.mxu0
          %594 = vst [vmem:[%s324] sm:$0xff] %v590
          %595 = vst [vmem:[%s324 + $0x8] sm:$0xff] %v592
        $region72: #{tpu_custom_call.1} parent=43 // pred_fallthru
          _
        %s596 = sand.u32 %s181, 1
        %s597 = scalar_lea.sflag [#allocation9], %s596
        %s598 = sand.u32 %s181, 1
        %s599 = smul.addr %s598, 16
        %s600 = scalar_lea.vmem [#allocation13], %s599
        // Predicated region
        $region73: #{tpu_custom_call.1} parent=43 // pred_check
          %p601 = pneg %p191
        $region74: #{tpu_custom_call.1} parent=43 // pred_check_branch
          %603 = sbr.rel (%p601) target = $region76
        $region75: #{tpu_custom_call.1} parent=43 // pred_region
          %s604 = smul.u32 %s29, %s28
          %s605 = smul.u32 2, %s604
          %607 = vsyncadd %s597, 0
          %s608 = smul.addr %s605, 8
          %s609 = scalar_lea.hbm %s6, %s608
          %s610 = sshll.u32 %s600, 4
          %s611 = int_to_ptr.vmem [resolvable:$true] %s610
          %s612 = sshll.u32 %s609, 4
          %s613 = int_to_ptr.hbm [resolvable:$true] %s612
          %618 = dma.vmem_to_hbm [thread:$0]  %s611, 256, %s613, %s597, 128, 128, 8
        $region76: #{tpu_custom_call.1} parent=43 // pred_fallthru
          _
      $region44: #{tpu_custom_call.1} parent=5 // pred_fallthru
        _
      %p619 = scmp.le.s32.totalorder 2, %s19
      // Predicated region
      $region77: #{tpu_custom_call.1} parent=5 // pred_check
        %p620 = pneg %p619
      $region78: #{tpu_custom_call.1} parent=5 // pred_check_branch
        %622 = sbr.rel (%p620) target = $region80
      $region79: #{tpu_custom_call.1} parent=5 // pred_region
        %s623 = ssub.s32 %s19, 2
        // Predicated region
        $region81: #{tpu_custom_call.1} parent=79 // pred_check
          %p624 = pneg %p197
        $region82: #{tpu_custom_call.1} parent=79 // pred_check_branch
          %626 = sbr.rel (%p624) target = $region84
        $region83: #{tpu_custom_call.1} parent=79 // pred_region
          %s627 = sand.u32 %s182, 1
          %s628 = scalar_lea.sflag [#allocation9], %s627
          %s629 = sand.u32 %s182, 1
          %s630 = smul.addr %s629, 16
          %s631 = scalar_lea.vmem [#allocation13], %s630
          %633 = dma.done %s628, 256
        $region84: #{tpu_custom_call.1} parent=79 // pred_fallthru
          _
      $region80: #{tpu_custom_call.1} parent=5 // pred_fallthru
        _
    $region6: #{tpu_custom_call.1} parent=1 // loop_footer
      %s23 = sadd.s32 1, %s19
    $region7: #{tpu_custom_call.1} parent=1 // loop_footer_branch
      %18 = sbr.rel target = $region3
    $region8: #{tpu_custom_call.1} parent=1 // loop_exit
      _
    %634 = vsyncpa [#allocation8], 1
    %s635 = scalar_lea.sflag [#allocation8], 1
    %636 = vsyncpa %s635, 1
    %637 = vsyncpa [#allocation11], 1
    %638 = vsyncpa [#allocation9], 1
    %s639 = scalar_lea.sflag [#allocation9], 1
    %640 = vsyncpa %s639, 1

// kernel: tpu_custom_call.1
$region0: #{tpu_custom_call.1}
  #allocation0 [shape = 'u32[]', space=smem, size = 0x4, offset = 0x4, fixed_abs, tag = 'smem constant byte address 0x4 - core index']
  #allocation1 [shape = 'u32[72,128]{1,0:T(1,128)}', space=vmem, size = 0x9000, scoped, tag = 'internal scratch']
  #allocation2 [shape = 'f32[1,128]{1,0:T(1,128)}', space=vmem, size = 0x200, scoped, tag = 'scratch operand']
  #allocation3 [shape = 'f32[1,128]{1,0:T(1,128)}', space=vmem, size = 0x200, scoped, tag = 'scratch operand']
  #allocation4 [shape = 'f32[1,128]{1,0:T(1,128)}', space=vmem, size = 0x200, scoped, tag = 'scratch operand']
  #allocation5 [shape = 'f32[1,128]{1,0:T(1,128)}', space=vmem, size = 0x200, scoped, tag = 'scratch operand']
  #allocation6 [shape = 'bf16[3,16,128]{2,1,0:T(8,128)(2,1)}', space=vmem, size = 0x3000, scoped, tag = 'scratch operand']
  %s0 = inlined_call_operand.hbm [shape: bf16[48,128], index: 0, kind: input, shape index: {}]
  %s1 = inlined_call_operand.hbm [shape: bf16[128,128], index: 1, kind: input, shape index: {}]
  %s2 = inlined_call_operand.vmem [shape: f32[1,128], index: 2, kind: input, shape index: {}]
  %s3 = inlined_call_operand.vmem [shape: f32[1,128], index: 3, kind: input, shape index: {}]
  %s4 = inlined_call_operand.hbm [shape: bf16[128,128], index: 4, kind: input, shape index: {}]
  %s5 = inlined_call_operand.vmem [shape: f32[1,128], index: 5, kind: input, shape index: {}]
  %s6 = inlined_call_operand.hbm [shape: f32[48,128], index: 6, kind: output, shape index: {}]
  %s7 = sld [smem:[#allocation0]]
  $region85: #{tpu_custom_call.1} parent=0
    _
  %s9 = ssub.s32 1, %s7
  %s10 = scalar_select 0, %s9, %s7
  $region1: #{tpu_custom_call.1} parent=0
    #allocation7 [shape = 'u8[8192]{0}', space=vmem, size = 0x2000, scoped, tag = 'input window, operand 0']
    #allocation8 [shape = 's32[2]{0}', space=sflag, size = 0x8, scoped, tag = 'scoped memory for tpu_custom_call.1']
    #allocation9 [shape = 's32[2]{0}', space=sflag, size = 0x8, scoped, tag = 'scoped memory for tpu_custom_call.1']
    #allocation10 [shape = 'u8[32768]{0}', space=vmem, size = 0x8000, scoped, tag = 'input window, operand 1, single buffered']
    #allocation11 [shape = 's32[1]{0}', space=sflag, size = 0x4, scoped, tag = 'scoped memory for tpu_custom_call.1']
    #allocation12 [shape = 'u8[32768]{0}', space=vmem, size = 0x8000, scoped, tag = 'input window, operand 4, single buffered']
    #allocation13 [shape = 'u8[16384]{0}', space=vmem, size = 0x4000, scoped, tag = 'output window, operand 0']
    %11 = vsyncpa [#allocation8], 0
    %s12 = scalar_lea.sflag [#allocation8], 1
    %13 = vsyncpa %s12, 0
    %14 = vsyncpa [#allocation11], 0
    %15 = vsyncpa [#allocation9], 0
    %s16 = scalar_lea.sflag [#allocation9], 1
    %17 = vsyncpa %s16, 0
    loop: start=0, step=1, limit=8
    $region2: #{tpu_custom_call.1} parent=1 // loop_pre_header
      _
    $region3: #{tpu_custom_call.1} parent=1 // loop_header
      %s19 = sphi 0, %s23
      %p20 = scmp.ge.s32.totalorder %s19, 8
      %s26 = sphi 0, %s38
      %s27 = sphi 0, %s34
      %s28 = sphi 0, %s26
      %s29 = sphi 0, %s27
      %s30 = sphi 0, %s28
      %s31 = sphi 0, %s29
      %s45 = sphi 0, %s47
      %s48 = sphi 0, %s45
      %s49 = sphi 0, %s48
      %s65 = sphi 0, %s49
      %s69 = sphi 0, %s69
      %s71 = sphi 0, %s69
      %s72 = sphi 0, %s71
      %s86 = sphi 0, %s72
      %s90 = sphi 0, %s90
      %s92 = sphi 0, %s90
      %s93 = sphi 0, %s92
      %s107 = sphi 0, %s93
      %s111 = sphi 0, %s111
      %s113 = sphi 0, %s111
      %s114 = sphi 0, %s113
      %s128 = sphi 0, %s114
      %s132 = sphi 0, %s132
      %s134 = sphi 0, %s132
      %s135 = sphi 0, %s134
      %s149 = sphi 0, %s135
      %s153 = sphi 0, %s153
      %s155 = sphi 0, %s153
      %s156 = sphi 0, %s155
      %s170 = sphi 0, %s156
      %s178 = sphi 0, %s180
      %s181 = sphi 0, %s178
      %s182 = sphi 0, %s181
      %s198 = sphi 0, %s182
    $region4: #{tpu_custom_call.1} parent=1 // loop_header_branch
      %22 = sbr.rel (%p20) target = $region8
    $region5: #{tpu_custom_call.1} parent=1 // loop_body
      %s24 = ssub.s32 %s19, 1
      %s25 = ssub.s32 %s19, 2
      %s32 = sadd.s32 1, %s27
      %p33 = scmp.ge.s32.totalorder %s32, 3
      %s34 = scalar_select %p33, 0, %s32
      %s35 = sadd.s32 1, %s26
      %s36 = scalar_select %p33, %s35, %s26
      %p37 = scmp.ge.s32.totalorder %s36, 2
      %s38 = scalar_select %p37, 0, %s36
      %s39 = ssub.s32 1, %s26
      %s40 = smul.u32 %s27, %s39
      %s41 = ssub.s32 1, %s38
      %s42 = smul.u32 %s34, %s41
      %s43 = ssub.s32 %s40, %s42
      %p44 = scmp.eq.s32.totalorder %s43, 0
      %s46 = sadd.s32 %s45, 1
      %s47 = scalar_select %p44, %s45, %s46
      %p50 = pneg %p44
      %p51 = scmp.eq.s32.totalorder %s19, 5
      %p52 = por %p50, %p51
      %p53 = scmp.ne.s32.totalorder %s45, %s48
      %p54 = scmp.eq.s32.totalorder %s19, 0
      %p55 = por %p53, %p54
      %p56 = scmp.ne.s32.totalorder %s45, %s48
      %p57 = scmp.eq.s32.totalorder %s24, 5
      %p58 = por %p56, %p57
      %p59 = scmp.ne.s32.totalorder %s48, %s49
      %p60 = scmp.eq.s32.totalorder %s24, 0
      %p61 = por %p59, %p60
      %p62 = scmp.ne.s32.totalorder %s48, %s49
      %p63 = scmp.eq.s32.totalorder %s25, 5
      %p64 = por %p62, %p63
      %p66 = scmp.ne.s32.totalorder %s49, %s65
      %p67 = scmp.eq.s32.totalorder %s25, 0
      %p68 = por %p66, %p67
      %s70 = sadd.s32 %s69, 1
      %p73 = scmp.eq.s32.totalorder %s19, 5
      %p74 = scmp.ne.s32.totalorder %s69, %s71
      %p75 = scmp.eq.s32.totalorder %s19, 0
      %p76 = por %p74, %p75
      %p77 = scmp.ne.s32.totalorder %s69, %s71
      %p78 = scmp.eq.s32.totalorder %s24, 5
      %p79 = por %p77, %p78
      %p80 = scmp.ne.s32.totalorder %s71, %s72
      %p81 = scmp.eq.s32.totalorder %s24, 0
      %p82 = por %p80, %p81
      %p83 = scmp.ne.s32.totalorder %s71, %s72
      %p84 = scmp.eq.s32.totalorder %s25, 5
      %p85 = por %p83, %p84
      %p87 = scmp.ne.s32.totalorder %s72, %s86
      %p88 = scmp.eq.s32.totalorder %s25, 0
      %p89 = por %p87, %p88
      %s91 = sadd.s32 %s90, 1
      %p94 = scmp.eq.s32.totalorder %s19, 5
      %p95 = scmp.ne.s32.totalorder %s90, %s92
      %p96 = scmp.eq.s32.totalorder %s19, 0
      %p97 = por %p95, %p96
      %p98 = scmp.ne.s32.totalorder %s90, %s92
      %p99 = scmp.eq.s32.totalorder %s24, 5
      %p100 = por %p98, %p99
      %p101 = scmp.ne.s32.totalorder %s92, %s93
      %p102 = scmp.eq.s32.totalorder %s24, 0
      %p103 = por %p101, %p102
      %p104 = scmp.ne.s32.totalorder %s92, %s93
      %p105 = scmp.eq.s32.totalorder %s25, 5
      %p106 = por %p104, %p105
      %p108 = scmp.ne.s32.totalorder %s93, %s107
      %p109 = scmp.eq.s32.totalorder %s25, 0
      %p110 = por %p108, %p109
      %s112 = sadd.s32 %s111, 1
      %p115 = scmp.eq.s32.totalorder %s19, 5
      %p116 = scmp.ne.s32.totalorder %s111, %s113
      %p117 = scmp.eq.s32.totalorder %s19, 0
      %p118 = por %p116, %p117
      %p119 = scmp.ne.s32.totalorder %s111, %s113
      %p120 = scmp.eq.s32.totalorder %s24, 5
      %p121 = por %p119, %p120
      %p122 = scmp.ne.s32.totalorder %s113, %s114
      %p123 = scmp.eq.s32.totalorder %s24, 0
      %p124 = por %p122, %p123
      %p125 = scmp.ne.s32.totalorder %s113, %s114
      %p126 = scmp.eq.s32.totalorder %s25, 5
      %p127 = por %p125, %p126
      %p129 = scmp.ne.s32.totalorder %s114, %s128
      %p130 = scmp.eq.s32.totalorder %s25, 0
      %p131 = por %p129, %p130
      %s133 = sadd.s32 %s132, 1
      %p136 = scmp.eq.s32.totalorder %s19, 5
      %p137 = scmp.ne.s32.totalorder %s132, %s134
      %p138 = scmp.eq.s32.totalorder %s19, 0
      %p139 = por %p137, %p138
      %p140 = scmp.ne.s32.totalorder %s132, %s134
      %p141 = scmp.eq.s32.totalorder %s24, 5
      %p142 = por %p140, %p141
      %p143 = scmp.ne.s32.totalorder %s134, %s135
      %p144 = scmp.eq.s32.totalorder %s24, 0
      %p145 = por %p143, %p144
      %p146 = scmp.ne.s32.totalorder %s134, %s135
      %p147 = scmp.eq.s32.totalorder %s25, 5
      %p148 = por %p146, %p147
      %p150 = scmp.ne.s32.totalorder %s135, %s149
      %p151 = scmp.eq.s32.totalorder %s25, 0
      %p152 = por %p150, %p151
      %s154 = sadd.s32 %s153, 1
      %p157 = scmp.eq.s32.totalorder %s19, 5
      %p158 = scmp.ne.s32.totalorder %s153, %s155
      %p159 = scmp.eq.s32.totalorder %s19, 0
      %p160 = por %p158, %p159
      %p161 = scmp.ne.s32.totalorder %s153, %s155
      %p162 = scmp.eq.s32.totalorder %s24, 5
      %p163 = por %p161, %p162
      %p164 = scmp.ne.s32.totalorder %s155, %s156
      %p165 = scmp.eq.s32.totalorder %s24, 0
      %p166 = por %p164, %p165
      %p167 = scmp.ne.s32.totalorder %s155, %s156
      %p168 = scmp.eq.s32.totalorder %s25, 5
      %p169 = por %p167, %p168
      %p171 = scmp.ne.s32.totalorder %s156, %s170
      %p172 = scmp.eq.s32.totalorder %s25, 0
      %p173 = por %p171, %p172
      %s174 = smul.u32 %s27, %s26
      %s175 = smul.u32 %s34, %s38
      %s176 = ssub.s32 %s174, %s175
      %p177 = scmp.eq.s32.totalorder %s176, 0
      %s179 = sadd.s32 %s178, 1
      %s180 = scalar_select %p177, %s178, %s179
      %p183 = pneg %p177
      %p184 = scmp.eq.s32.totalorder %s19, 5
      %p185 = por %p183, %p184
      %p186 = scmp.ne.s32.totalorder %s178, %s181
      %p187 = scmp.eq.s32.totalorder %s19, 0
      %p188 = por %p186, %p187
      %p189 = scmp.ne.s32.totalorder %s178, %s181
      %p190 = scmp.eq.s32.totalorder %s24, 5
      %p191 = por %p189, %p190
      %p192 = scmp.ne.s32.totalorder %s181, %s182
      %p193 = scmp.eq.s32.totalorder %s24, 0
      %p194 = por %p192, %p193
      %p195 = scmp.ne.s32.totalorder %s181, %s182
      %p196 = scmp.eq.s32.totalorder %s25, 5
      %p197 = por %p195, %p196
      %p199 = scmp.ne.s32.totalorder %s182, %s198
      %p200 = scmp.eq.s32.totalorder %s25, 0
      %p201 = por %p199, %p200
      %p202 = scmp.le.s32.totalorder 1, %s19
      %p203 = scmp.lt.s32.totalorder %s19, 7
      %p204 = pnand %p202, %p203
      %p205 = pneg %p204
      // Predicated region
      $region9: #{tpu_custom_call.1} parent=5 // pred_check
        _
      $region10: #{tpu_custom_call.1} parent=5 // pred_check_branch
        %207 = sbr.rel (%p204) target = $region12
      $region11: #{tpu_custom_call.1} parent=5 // pred_region
        %s208 = ssub.s32 %s19, 1
        // Predicated region
        $region13: #{tpu_custom_call.1} parent=11 // pred_check
          %p209 = pneg %p82
        $region14: #{tpu_custom_call.1} parent=11 // pred_check_branch
          %211 = sbr.rel (%p209) target = $region16
        $region15: #{tpu_custom_call.1} parent=11 // pred_region
          %213 = vsyncadd [#allocation11], 0
          %s214 = sshll.u32 %s1, 4
          %s215 = int_to_ptr.hbm [resolvable:$true] %s214
          %s216 = sshll.u32 [#allocation10], 4
          %s217 = int_to_ptr.vmem [resolvable:$true] %s216
          %222 = dma.hbm_to_vmem [thread:$0]  %s215, 1024, %s217, [#allocation11], 64, 64, 4
        $region16: #{tpu_custom_call.1} parent=11 // pred_fallthru
          _
        // Predicated region
        $region17: #{tpu_custom_call.1} parent=11 // pred_check
          %p223 = pneg %p103
        $region18: #{tpu_custom_call.1} parent=11 // pred_check_branch
          %225 = sbr.rel (%p223) target = $region20
        $region19: #{tpu_custom_call.1} parent=11 // pred_region
          _
        $region20: #{tpu_custom_call.1} parent=11 // pred_fallthru
          _
        // Predicated region
        $region21: #{tpu_custom_call.1} parent=11 // pred_check
          %p226 = pneg %p124
        $region22: #{tpu_custom_call.1} parent=11 // pred_check_branch
          %228 = sbr.rel (%p226) target = $region24
        $region23: #{tpu_custom_call.1} parent=11 // pred_region
          _
        $region24: #{tpu_custom_call.1} parent=11 // pred_fallthru
          _
        // Predicated region
        $region25: #{tpu_custom_call.1} parent=11 // pred_check
          %p229 = pneg %p145
        $region26: #{tpu_custom_call.1} parent=11 // pred_check_branch
          %231 = sbr.rel (%p229) target = $region28
        $region27: #{tpu_custom_call.1} parent=11 // pred_region
          %233 = vsyncadd [#allocation11], 0
          %s234 = sshll.u32 %s4, 4
          %s235 = int_to_ptr.hbm [resolvable:$true] %s234
          %s236 = sshll.u32 [#allocation12], 4
          %s237 = int_to_ptr.vmem [resolvable:$true] %s236
          %242 = dma.hbm_to_vmem [thread:$0]  %s235, 1024, %s237, [#allocation11], 64, 64, 4
        $region28: #{tpu_custom_call.1} parent=11 // pred_fallthru
          _
        // Predicated region
        $region29: #{tpu_custom_call.1} parent=11 // pred_check
          %p243 = pneg %p166
        $region30: #{tpu_custom_call.1} parent=11 // pred_check_branch
          %245 = sbr.rel (%p243) target = $region32
        $region31: #{tpu_custom_call.1} parent=11 // pred_region
          _
        $region32: #{tpu_custom_call.1} parent=11 // pred_fallthru
          _
      $region12: #{tpu_custom_call.1} parent=5 // pred_fallthru
        _
      %p246 = scmp.lt.s32.totalorder %s19, 6
      // Predicated region
      $region33: #{tpu_custom_call.1} parent=5 // pred_check
        %p247 = pneg %p246
      $region34: #{tpu_custom_call.1} parent=5 // pred_check_branch
        %249 = sbr.rel (%p247) target = $region36
      $region35: #{tpu_custom_call.1} parent=5 // pred_region
        // Predicated region
        $region37: #{tpu_custom_call.1} parent=35 // pred_check
          %p250 = pneg %p55
        $region38: #{tpu_custom_call.1} parent=35 // pred_check_branch
          %252 = sbr.rel (%p250) target = $region40
        $region39: #{tpu_custom_call.1} parent=35 // pred_region
          %s253 = sand.u32 %s45, 1
          %s254 = scalar_lea.sflag [#allocation8], %s253
          %s255 = sand.u32 %s45, 1
          %s256 = smul.addr %s255, 8
          %s257 = scalar_lea.vmem [#allocation7], %s256
          %s258 = ssub.s32 1, %s26
          %s259 = smul.u32 %s27, %s258
          %s260 = smul.u32 2, %s259
          %262 = vsyncadd %s254, 0
          %s263 = smul.addr %s260, 4
          %s264 = scalar_lea.hbm %s0, %s263
          %s265 = sshll.u32 %s264, 4
          %s266 = int_to_ptr.hbm [resolvable:$true] %s265
          %s267 = sshll.u32 %s257, 4
          %s268 = int_to_ptr.vmem [resolvable:$true] %s267
          %273 = dma.hbm_to_vmem [thread:$0]  %s266, 128, %s268, %s254, 64, 64, 4
        $region40: #{tpu_custom_call.1} parent=35 // pred_fallthru
          _
      $region36: #{tpu_custom_call.1} parent=5 // pred_fallthru
        _
      %p274 = scmp.le.s32.totalorder 1, %s19
      %p275 = scmp.lt.s32.totalorder %s19, 7
      %p276 = pnand %p274, %p275
      %p277 = pneg %p276
      // Predicated region
      $region41: #{tpu_custom_call.1} parent=5 // pred_check
        _
      $region42: #{tpu_custom_call.1} parent=5 // pred_check_branch
        %279 = sbr.rel (%p276) target = $region44
      $region43: #{tpu_custom_call.1} parent=5 // pred_region
        %s280 = ssub.s32 %s19, 1
        %s281 = sand.u32 %s48, 1
        %s282 = scalar_lea.sflag [#allocation8], %s281
        %s283 = sand.u32 %s48, 1
        %s284 = smul.addr %s283, 8
        %s285 = scalar_lea.vmem [#allocation7], %s284
        // Predicated region
        $region45: #{tpu_custom_call.1} parent=43 // pred_check
          %p286 = pneg %p61
        $region46: #{tpu_custom_call.1} parent=43 // pred_check_branch
          %288 = sbr.rel (%p286) target = $region48
        $region47: #{tpu_custom_call.1} parent=43 // pred_region
          %290 = dma.done %s282, 128
        $region48: #{tpu_custom_call.1} parent=43 // pred_fallthru
          _
        // Predicated region
        $region49: #{tpu_custom_call.1} parent=43 // pred_check
          %p291 = pneg %p82
        $region50: #{tpu_custom_call.1} parent=43 // pred_check_branch
          %293 = sbr.rel (%p291) target = $region52
        $region51: #{tpu_custom_call.1} parent=43 // pred_region
          %295 = dma.done [#allocation11], 1024
        $region52: #{tpu_custom_call.1} parent=43 // pred_fallthru
          _
        // Predicated region
        $region53: #{tpu_custom_call.1} parent=43 // pred_check
          %p296 = pneg %p145
        $region54: #{tpu_custom_call.1} parent=43 // pred_check_branch
          %298 = sbr.rel (%p296) target = $region56
        $region55: #{tpu_custom_call.1} parent=43 // pred_region
          %300 = dma.done [#allocation11], 1024
        $region56: #{tpu_custom_call.1} parent=43 // pred_fallthru
          _
        %s301 = sand.u32 %s48, 1
        %s302 = scalar_lea.sflag [#allocation8], %s301
        %s303 = sand.u32 %s48, 1
        %s304 = smul.addr %s303, 8
        %s305 = scalar_lea.vmem [#allocation7], %s304
        %p306 = pneg %p61
        %p307 = pneg %p58
        %p308 = pneg %p82
        %p309 = pneg %p79
        %p310 = pneg %p103
        %p311 = pneg %p100
        %p312 = pneg %p124
        %p313 = pneg %p121
        %p314 = pneg %p145
        %p315 = pneg %p142
        %p316 = pneg %p166
        %p317 = pneg %p163
        %p318 = pneg %p194
        %p319 = pneg %p191
        %s320 = sand.u32 %s181, 1
        %s321 = scalar_lea.sflag [#allocation9], %s320
        %s322 = sand.u32 %s181, 1
        %s323 = smul.addr %s322, 16
        %s324 = scalar_lea.vmem [#allocation13], %s323
        %s325 = ssub.s32 1, %s28
        %s326 = smul.u32 %s29, %s325
        %s327 = smul.u32 2, %s326
        %s328 = smul.u32 %s29, %s28
        %s329 = smul.u32 2, %s328
        %p330 = scmp.eq.s32.totalorder %s28, 0
        // Predicated region
        $region57: #{tpu_custom_call.1} parent=43 // pred_check
          %p331 = pneg %p330
        $region58: #{tpu_custom_call.1} parent=43 // pred_check_branch
          %333 = sbr.rel (%p331) target = $region60
        $region59: #{tpu_custom_call.1} parent=43 // pred_region
          %v334 = vld [vmem:[%s285] sm:$0xf]
          %v335 = vld [vmem:[%s285 + $0x4] sm:$0xf]
          %v336 = vld [vmem:[#allocation10] sm:$0xf]
          %v337 = vld [vmem:[#allocation10 + $0x4] sm:$0xf]
          %v338 = vld [vmem:[#allocation10 + $0x8] sm:$0xf]
          %v339 = vld [vmem:[#allocation10 + $0xc] sm:$0xf]
          %v340 = vld [vmem:[#allocation10 + $0x10] sm:$0xf]
          %v341 = vld [vmem:[#allocation10 + $0x14] sm:$0xf]
          %v342 = vld [vmem:[#allocation10 + $0x18] sm:$0xf]
          %v343 = vld [vmem:[#allocation10 + $0x1c] sm:$0xf]
          %v344 = vld [vmem:[#allocation10 + $0x20] sm:$0xf]
          %v345 = vld [vmem:[#allocation10 + $0x24] sm:$0xf]
          %v346 = vld [vmem:[#allocation10 + $0x28] sm:$0xf]
          %v347 = vld [vmem:[#allocation10 + $0x2c] sm:$0xf]
          %v348 = vld [vmem:[#allocation10 + $0x30] sm:$0xf]
          %v349 = vld [vmem:[#allocation10 + $0x34] sm:$0xf]
          %v350 = vld [vmem:[#allocation10 + $0x38] sm:$0xf]
          %v351 = vld [vmem:[#allocation10 + $0x3c] sm:$0xf]
          %v354 = vunpack.c.l.b16 %v334
          %v355 = vunpack.c.l.b16 %v335
          %v356 = vpack.c.b16 %v355, %v354
          %v374 = vunpack.c.l.b16 %v336
          %v375 = vunpack.c.l.b16 %v337
          %v376 = vunpack.c.l.b16 %v338
          %v377 = vunpack.c.l.b16 %v339
          %v378 = vunpack.c.l.b16 %v340
          %v379 = vunpack.c.l.b16 %v341
          %v380 = vunpack.c.l.b16 %v342
          %v381 = vunpack.c.l.b16 %v343
          %v382 = vunpack.c.l.b16 %v344
          %v383 = vunpack.c.l.b16 %v345
          %v384 = vunpack.c.l.b16 %v346
          %v385 = vunpack.c.l.b16 %v347
          %v386 = vunpack.c.l.b16 %v348
          %v387 = vunpack.c.l.b16 %v349
          %v388 = vunpack.c.l.b16 %v350
          %v389 = vunpack.c.l.b16 %v351
          %v390 = vpack.c.b16 %v375, %v374
          %v391 = vpack.c.b16 %v377, %v376
          %v392 = vpack.c.b16 %v379, %v378
          %v393 = vpack.c.b16 %v381, %v380
          %v394 = vpack.c.b16 %v383, %v382
          %v395 = vpack.c.b16 %v385, %v384
          %v396 = vpack.c.b16 %v387, %v386
          %v397 = vpack.c.b16 %v389, %v388
          %406 = vmatpush.bf16.msra.mxu0 %v397
          %407 = vmatpush.bf16.msra.mxu0 %v396
          %408 = vmatpush.bf16.msra.mxu0 %v395
          %409 = vmatpush.bf16.msra.mxu0 %v394
          %410 = vmatpush.bf16.msra.mxu0 %v393
          %411 = vmatpush.bf16.msra.mxu0 %v392
          %412 = vmatpush.bf16.msra.mxu0 %v391
          %413 = vmatpush.bf16.msra.mxu0 %v390
          %414 = vmatmul.bf16.gmra.mxu0 %v356
          %v415 = vpop.f32.mrf.mxu0
          %v416 = vadd.f32 0.0, %v415
          %v417 = vpop.f32.mrf.mxu0
          %v418 = vadd.f32 0.0, %v417
          %419 = vdwg.mxu0
          %v420 = vpack.c.bf16 %v416, %v416
          %v421 = vpack.c.bf16 %v418, %v418
          %s422 = smul.u32 %s29, 2
          %s423 = smul.addr %s422, 4
          %s424 = scalar_lea.vmem [#allocation6], %s423
          %425 = vst [vmem:[%s424] sm:$0xf] %v420
          %426 = vst [vmem:[%s424 + $0x4] sm:$0xf] %v421
          %p427 = scmp.eq.s32.totalorder %s29, 0
          // Predicated region
          $region61: #{tpu_custom_call.1} parent=59 // pred_check
            %p428 = pneg %p427
          $region62: #{tpu_custom_call.1} parent=59 // pred_check_branch
            %430 = sbr.rel (%p428) target = $region64
          $region63: #{tpu_custom_call.1} parent=59 // pred_region
            %431 = vst [vmem:[#allocation2] sm:$0x1] 0.0
            %432 = vst [vmem:[#allocation3] sm:$0x1] 0.0
          $region64: #{tpu_custom_call.1} parent=59 // pred_fallthru
            _
          %v433 = vld [vmem:[#allocation2] sm:$0x1]
          %v434 = vadd.f32 %v416, %v418
          %v435 = vrot.slane %v434, 4
          %v436 = vadd.f32 %v434, %v435
          %v437 = vrot.slane %v436, 2
          %v438 = vadd.f32 %v436, %v437
          %v439 = vrot.slane %v438, 1
          %v440 = vadd.f32 %v438, %v439
          %v441 = vadd.f32 %v433, %v440
          %442 = vst [vmem:[#allocation2] sm:$0x1] %v441
          %v443 = vld [vmem:[#allocation3] sm:$0x1]
          %v444 = vmul.f32 %v416, %v416
          %v445 = vmul.f32 %v418, %v418
          %v446 = vadd.f32 %v444, %v445
          %v447 = vrot.slane %v446, 4
          %v448 = vadd.f32 %v446, %v447
          %v449 = vrot.slane %v448, 2
          %v450 = vadd.f32 %v448, %v449
          %v451 = vrot.slane %v450, 1
          %v452 = vadd.f32 %v450, %v451
          %v453 = vadd.f32 %v443, %v452
          %454 = vst [vmem:[#allocation3] sm:$0x1] %v453
          %p455 = scmp.eq.s32.totalorder %s29, 2
          // Predicated region
          $region65: #{tpu_custom_call.1} parent=59 // pred_check
            %p456 = pneg %p455
          $region66: #{tpu_custom_call.1} parent=59 // pred_check_branch
            %458 = sbr.rel (%p456) target = $region68
          $region67: #{tpu_custom_call.1} parent=59 // pred_region
            %v459 = vld [vmem:[#allocation2] sm:$0x1]
            %v460 = vmul.f32 %v459, 0.025
            %v461 = vld [vmem:[#allocation3] sm:$0x1]
            %v462 = vmul.f32 %v461, 0.025
            %v463 = vmul.f32 %v460, %v460
            %v464 = vsub.f32 %v462, %v463
            %v465 = vmax.f32 %v464, 0.0
            %v466 = vld [vmem:[%s2] sm:$0x1]
            %v467 = vadd.f32 %v465, 1e-05
            %v468 = vrsqrt.pop %v467
            %v469 = vmul.f32 %v468, %v467
            %v470 = vmul.f32 %v469, %v468
            %v471 = vmul.f32 0.5, %v470
            %v472 = vsub.f32 1.5, %v471
            %v473 = vmul.f32 %v468, %v472
            %vm474 = vweird.f32 %v467
            %vm475 = vweird.f32 %v468
            %vm476 = vmor %vm474, %vm475
            %v477 = vsel %vm476, %v468, %v473
            %v478 = vmul.f32 %v466, %v477
            %479 = vst [vmem:[#allocation4] sm:$0x1] %v478
            %v480 = vld [vmem:[%s3] sm:$0x1]
            %v481 = vmul.f32 %v460, %v478
            %v482 = vsub.f32 %v480, %v481
            %483 = vst [vmem:[#allocation5] sm:$0x1] %v482
          $region68: #{tpu_custom_call.1} parent=59 // pred_fallthru
            _
        $region60: #{tpu_custom_call.1} parent=43 // pred_fallthru
          _
        %p484 = scmp.eq.s32.totalorder %s28, 1
        // Predicated region
        $region69: #{tpu_custom_call.1} parent=43 // pred_check
          %p485 = pneg %p484
        $region70: #{tpu_custom_call.1} parent=43 // pred_check_branch
          %487 = sbr.rel (%p485) target = $region72
        $region71: #{tpu_custom_call.1} parent=43 // pred_region
          %s488 = smul.u32 %s29, 2
          %s489 = smul.addr %s488, 4
          %s490 = scalar_lea.vmem [#allocation6], %s489
          %v491 = vld [vmem:[%s490] sm:$0xf]
          %v492 = vld [vmem:[%s490 + $0x4] sm:$0xf]
          %v493 = vunpack.c.l.bf16 %v491
          %v494 = vunpack.c.l.bf16 %v492
          %v495 = vld [vmem:[#allocation4] sm:$0x1]
          %v497 = vperm.slane %v495, 0
          %v499 = vmul.f32 %v493, %v497
          %v500 = vmul.f32 %v494, %v497
          %v501 = vld [vmem:[#allocation5] sm:$0x1]
          %v503 = vperm.slane %v501, 0
          %v505 = vadd.f32 %v499, %v503
          %v506 = vadd.f32 %v500, %v503
          %v507 = vmul.f32 %v505, 0.01
          %v508 = vmul.f32 %v506, 0.01
          %v509 = vmax.f32 %v505, %v507
          %v510 = vmax.f32 %v506, %v508
          %v511 = vpack.c.bf16 %v510, %v509
          %v512 = vld [vmem:[#allocation12] sm:$0xf]
          %v513 = vld [vmem:[#allocation12 + $0x4] sm:$0xf]
          %v514 = vld [vmem:[#allocation12 + $0x8] sm:$0xf]
          %v515 = vld [vmem:[#allocation12 + $0xc] sm:$0xf]
          %v516 = vld [vmem:[#allocation12 + $0x10] sm:$0xf]
          %v517 = vld [vmem:[#allocation12 + $0x14] sm:$0xf]
          %v518 = vld [vmem:[#allocation12 + $0x18] sm:$0xf]
          %v519 = vld [vmem:[#allocation12 + $0x1c] sm:$0xf]
          %v520 = vld [vmem:[#allocation12 + $0x20] sm:$0xf]
          %v521 = vld [vmem:[#allocation12 + $0x24] sm:$0xf]
          %v522 = vld [vmem:[#allocation12 + $0x28] sm:$0xf]
          %v523 = vld [vmem:[#allocation12 + $0x2c] sm:$0xf]
          %v524 = vld [vmem:[#allocation12 + $0x30] sm:$0xf]
          %v525 = vld [vmem:[#allocation12 + $0x34] sm:$0xf]
          %v526 = vld [vmem:[#allocation12 + $0x38] sm:$0xf]
          %v527 = vld [vmem:[#allocation12 + $0x3c] sm:$0xf]
          %v528 = vld [vmem:[%s5] sm:$0x1]
          %v530 = vperm.slane %v528, 0
          %v548 = vunpack.c.l.b16 %v512
          %v549 = vunpack.c.l.b16 %v513
          %v550 = vunpack.c.l.b16 %v514
          %v551 = vunpack.c.l.b16 %v515
          %v552 = vunpack.c.l.b16 %v516
          %v553 = vunpack.c.l.b16 %v517
          %v554 = vunpack.c.l.b16 %v518
          %v555 = vunpack.c.l.b16 %v519
          %v556 = vunpack.c.l.b16 %v520
          %v557 = vunpack.c.l.b16 %v521
          %v558 = vunpack.c.l.b16 %v522
          %v559 = vunpack.c.l.b16 %v523
          %v560 = vunpack.c.l.b16 %v524
          %v561 = vunpack.c.l.b16 %v525
          %v562 = vunpack.c.l.b16 %v526
          %v563 = vunpack.c.l.b16 %v527
          %v564 = vpack.c.b16 %v549, %v548
          %v565 = vpack.c.b16 %v551, %v550
          %v566 = vpack.c.b16 %v553, %v552
          %v567 = vpack.c.b16 %v555, %v554
          %v568 = vpack.c.b16 %v557, %v556
          %v569 = vpack.c.b16 %v559, %v558
          %v570 = vpack.c.b16 %v561, %v560
          %v571 = vpack.c.b16 %v563, %v562
          %580 = vmatpush.bf16.msra.mxu0 %v571
          %581 = vmatpush.bf16.msra.mxu0 %v570
          %582 = vmatpush.bf16.msra.mxu0 %v569
          %583 = vmatpush.bf16.msra.mxu0 %v568
          %584 = vmatpush.bf16.msra.mxu0 %v567
          %585 = vmatpush.bf16.msra.mxu0 %v566
          %586 = vmatpush.bf16.msra.mxu0 %v565
          %587 = vmatpush.bf16.msra.mxu0 %v564
          %588 = vmatmul.bf16.gmra.mxu0 %v511
          %v589 = vpop.f32.mrf.mxu0
          %v590 = vadd.f32 %v530, %v589
          %v591 = vpop.f32.mrf.mxu0
          %v592 = vadd.f32 %v530, %v591
          %593 = vdwg.mxu0
          %594 = vst [vmem:[%s324] sm:$0xff] %v590
          %595 = vst [vmem:[%s324 + $0x8] sm:$0xff] %v592
        $region72: #{tpu_custom_call.1} parent=43 // pred_fallthru
          _
        %s596 = sand.u32 %s181, 1
        %s597 = scalar_lea.sflag [#allocation9], %s596
        %s598 = sand.u32 %s181, 1
        %s599 = smul.addr %s598, 16
        %s600 = scalar_lea.vmem [#allocation13], %s599
        // Predicated region
        $region73: #{tpu_custom_call.1} parent=43 // pred_check
          %p601 = pneg %p191
        $region74: #{tpu_custom_call.1} parent=43 // pred_check_branch
          %603 = sbr.rel (%p601) target = $region76
        $region75: #{tpu_custom_call.1} parent=43 // pred_region
          %s604 = smul.u32 %s29, %s28
          %s605 = smul.u32 2, %s604
          %607 = vsyncadd %s597, 0
          %s608 = smul.addr %s605, 8
          %s609 = scalar_lea.hbm %s6, %s608
          %s610 = sshll.u32 %s600, 4
          %s611 = int_to_ptr.vmem [resolvable:$true] %s610
          %s612 = sshll.u32 %s609, 4
          %s613 = int_to_ptr.hbm [resolvable:$true] %s612
          %618 = dma.vmem_to_hbm [thread:$0]  %s611, 256, %s613, %s597, 128, 128, 8
        $region76: #{tpu_custom_call.1} parent=43 // pred_fallthru
          _
      $region44: #{tpu_custom_call.1} parent=5 // pred_fallthru
        _
      %p619 = scmp.le.s32.totalorder 2, %s19
      // Predicated region
      $region77: #{tpu_custom_call.1} parent=5 // pred_check
        %p620 = pneg %p619
      $region78: #{tpu_custom_call.1} parent=5 // pred_check_branch
        %622 = sbr.rel (%p620) target = $region80
      $region79: #{tpu_custom_call.1} parent=5 // pred_region
        %s623 = ssub.s32 %s19, 2
        // Predicated region
        $region81: #{tpu_custom_call.1} parent=79 // pred_check
          %p624 = pneg %p197
        $region82: #{tpu_custom_call.1} parent=79 // pred_check_branch
          %626 = sbr.rel (%p624) target = $region84
        $region83: #{tpu_custom_call.1} parent=79 // pred_region
          %s627 = sand.u32 %s182, 1
          %s628 = scalar_lea.sflag [#allocation9], %s627
          %s629 = sand.u32 %s182, 1
          %s630 = smul.addr %s629, 16
          %s631 = scalar_lea.vmem [#allocation13], %s630
          %633 = dma.done %s628, 256
        $region84: #{tpu_custom_call.1} parent=79 // pred_fallthru
          _
      $region80: #{tpu_custom_call.1} parent=5 // pred_fallthru
        _
    $region6: #{tpu_custom_call.1} parent=1 // loop_footer
      %s23 = sadd.s32 1, %s19
    $region7: #{tpu_custom_call.1} parent=1 // loop_footer_branch
      %18 = sbr.rel target = $region3
    $region8: #{tpu_custom_call.1} parent=1 // loop_exit
      _
    %634 = vsyncpa [#allocation8], 1
    %s635 = scalar_lea.sflag [#allocation8], 1
    %636 = vsyncpa %s635, 1
    %637 = vsyncpa [#allocation11], 1
    %638 = vsyncpa [#allocation9], 1
    %s639 = scalar_lea.sflag [#allocation9], 1
    %640 = vsyncpa %s639, 1

</llo_original>
